<compile_context>
chip_gen: v6e
topology: v6e:2x2x1
jax: 0.10.0
libtpu: 0.0.40
codegen_flags: <defaults>
</compile_context>

<pallas_src>
import functools

import jax
import jax.numpy as jnp
from jax.experimental import pallas as pl
from jax.experimental.pallas import tpu as pltpu

EPS = 1e-5
NUM_CLASSES = 2
H1, H2 = 512, 256
OUT_PAD = 128          # lane-dense output width (real classes in lanes [0, 2))
NEG_INF = -1e30        # mask value for padded logit lanes (NOT -inf)


def _round_up(n, m):
    return ((n + m - 1) // m) * m


def _k_tiling(ft_concat_size, block_k):
    """K-tile size (multiple of 128) and padded K for the first Linear."""
    k128 = _round_up(max(ft_concat_size, 128), 128)
    tk = min(k128, _round_up(block_k, 128))
    k_pad = _round_up(k128, tk)
    return tk, k_pad


# ---------------------------------------------------------------------------
# Kernel
# ---------------------------------------------------------------------------
def classifier_kernel(x_ref,
                      w1_ref, g1_ref, be1_ref,
                      w2_ref, g2_ref, be2_ref,
                      w3_ref, b3_ref,
                      o_ref, acc_ref):
    k = pl.program_id(0)

    @pl.when(k == 0)
    def _():
        acc_ref[...] = jnp.zeros_like(acc_ref)

    # ---- Partial first Linear over this K tile (input ReLU fused; bf16 MXU,
    #      f32 accumulation).  Bias b1 omitted: training-mode BN cancels it.
    h0 = jnp.maximum(x_ref[...], 0.0).astype(jnp.bfloat16)
    acc_ref[...] += jnp.dot(h0, w1_ref[...], preferred_element_type=jnp.float32)

    @pl.when(k == pl.num_programs(0) - 1)
    def _():
        inv_b = 1.0 / acc_ref.shape[0]

        # ---- BatchNorm1d(512) folded into one scale/shift (one-pass moments)
        h1 = acc_ref[...]
        mu1 = jnp.sum(h1, axis=0, keepdims=True) * inv_b
        ex1 = jnp.sum(h1 * h1, axis=0, keepdims=True) * inv_b
        var1 = jnp.maximum(ex1 - mu1 * mu1, 0.0)
        scale1 = jax.lax.rsqrt(var1 + EPS) * g1_ref[...]
        shift1 = be1_ref[...] - mu1 * scale1
        h1 = jnp.maximum(h1 * scale1 + shift1, 0.0).astype(jnp.bfloat16)

        # ---- Linear(512, 256) (bias BN-cancelled) + BatchNorm1d(256) + ReLU
        h2 = jnp.dot(h1, w2_ref[...], preferred_element_type=jnp.float32)
        mu2 = jnp.sum(h2, axis=0, keepdims=True) * inv_b
        ex2 = jnp.sum(h2 * h2, axis=0, keepdims=True) * inv_b
        var2 = jnp.maximum(ex2 - mu2 * mu2, 0.0)
        scale2 = jax.lax.rsqrt(var2 + EPS) * g2_ref[...]
        shift2 = be2_ref[...] - mu2 * scale2
        h2 = jnp.maximum(h2 * scale2 + shift2, 0.0).astype(jnp.bfloat16)

        # ---- Linear(256, 2) padded to 128 lanes (lane-dense store) + Softmax
        logits = (jnp.dot(h2, w3_ref[...], preferred_element_type=jnp.float32)
                  + b3_ref[...])
        lane = jax.lax.broadcasted_iota(jnp.int32, logits.shape, 1)
        logits = jnp.where(lane < NUM_CLASSES, logits, NEG_INF)
        m = jnp.max(logits, axis=1, keepdims=True)
        e = jnp.exp(logits - m)
        denom = jnp.sum(e, axis=1, keepdims=True)
        o_ref[...] = e / denom          # exact divide: rows sum to 1


# ---------------------------------------------------------------------------
# Wrapper
# ---------------------------------------------------------------------------
@functools.partial(jax.jit, static_argnames=("block_k",))
def food5k_classifier(x, prepared, *, block_k=2048):
    """x: (B, F) float32; prepared: dict from prepare_params().  -> (B, 2)."""
    B, F = x.shape
    tk, k_pad = _k_tiling(F, block_k)

    w1 = prepared["w1"]
    assert w1.shape[0] == k_pad, "prepared params were built with a different block_k"
    if k_pad != F:
        x = jnp.pad(x, ((0, 0), (0, k_pad - F)))     # zeros: ReLU(0)*w = 0

    grid_k = k_pad // tk

    args = (x,
            w1, prepared["g1"], prepared["be1"],
            prepared["w2"], prepared["g2"], prepared["be2"],
            prepared["w3"], prepared["b3"])

    # Resident-set estimate (double-buffered K tiles + resident tail weights).
    resident = (2 * B * tk * 4                 # x K-tiles (f32)
                + 2 * tk * H1 * 2              # w1 K-tiles (bf16)
                + B * H1 * 4                   # f32 accumulator scratch
                + H1 * H2 * 2 + H2 * OUT_PAD * 2   # w2, w3 (bf16)
                + 4 * (2 * H1 + 2 * H2 + OUT_PAD)  # gamma/beta/b3 (f32)
                + 2 * B * OUT_PAD * 4)         # output block
    vmem_limit = int(min(max(2 * resident, 8 << 20), 48 << 20))

    flops = 2 * B * (k_pad * H1 + H1 * H2 + H2 * OUT_PAD)
    transcendentals = B * OUT_PAD + H1 + H2          # exp + rsqrt
    bytes_accessed = (B * k_pad * 4 + k_pad * H1 * 2 + H1 * H2 * 2
                      + H2 * OUT_PAD * 2
                      + 4 * (2 * H1 + 2 * H2 + OUT_PAD)
                      + B * OUT_PAD * 4)

    grid_spec = pltpu.PrefetchScalarGridSpec(
        num_scalar_prefetch=0,
        grid=(grid_k,),
        in_specs=[
            pl.BlockSpec((B, tk), lambda k: (0, k)),        # x K-tile
            pl.BlockSpec((tk, H1), lambda k: (k, 0)),       # w1 K-tile
            pl.BlockSpec((1, H1), lambda k: (0, 0)),        # g1
            pl.BlockSpec((1, H1), lambda k: (0, 0)),        # be1
            pl.BlockSpec((H1, H2), lambda k: (0, 0)),       # w2
            pl.BlockSpec((1, H2), lambda k: (0, 0)),        # g2
            pl.BlockSpec((1, H2), lambda k: (0, 0)),        # be2
            pl.BlockSpec((H2, OUT_PAD), lambda k: (0, 0)),  # w3 (padded)
            pl.BlockSpec((1, OUT_PAD), lambda k: (0, 0)),   # b3 (padded)
        ],
        out_specs=pl.BlockSpec((B, OUT_PAD), lambda k: (0, 0)),
        scratch_shapes=[pltpu.VMEM((B, H1), jnp.float32)],
    )

    out = pl.pallas_call(
        classifier_kernel,
        out_shape=jax.ShapeDtypeStruct((B, OUT_PAD), jnp.float32),
        grid_spec=grid_spec,
        compiler_params=pltpu.CompilerParams(
            dimension_semantics=("arbitrary",),       # K is a reduction axis
            vmem_limit_bytes=vmem_limit),
        cost_estimate=pl.CostEstimate(flops=flops,
                                      transcendentals=transcendentals,
                                      bytes_accessed=bytes_accessed),
    )(*args)
    return out[:, :NUM_CLASSES]


# ---------------------------------------------------------------------------
# Parameter prep (done ONCE, outside the per-call path)
# ---------------------------------------------------------------------------
def prepare_params(params, *, block_k=2048):
    """Casts / pads the raw params into the kernel layout (one-time cost)."""
    F = params["w1"].shape[0]
    _, k_pad = _k_tiling(F, block_k)

    w1 = params["w1"].astype(jnp.bfloat16)
    if k_pad != F:
        w1 = jnp.pad(w1, ((0, k_pad - F), (0, 0)))          # zero K-rows
    w2 = params["w2"].astype(jnp.bfloat16)
    w3 = jnp.zeros((H2, OUT_PAD), jnp.bfloat16).at[:, :NUM_CLASSES].set(
        params["w3"].astype(jnp.bfloat16))
    b3 = jnp.zeros((1, OUT_PAD), jnp.float32).at[:, :NUM_CLASSES].set(params["b3"])

    return dict(w1=w1, g1=params["g1"], be1=params["be1"],
                w2=w2, g2=params["g2"], be2=params["be2"],
                w3=w3, b3=b3)


def init_params(key, ft_concat_size):
    """Deterministic synthetic parameters (PyTorch-like init, stored transposed)."""
    ks = jax.random.split(key, 6)

    def lin(kw, kb, fan_in, fan_out):
        bound = 1.0 / jnp.sqrt(fan_in)
        w = jax.random.uniform(kw, (fan_in, fan_out), jnp.float32, -bound, bound)
        b = jax.random.uniform(kb, (1, fan_out), jnp.float32, -bound, bound)
        return w, b

    w1, b1 = lin(ks[0], ks[1], ft_concat_size, H1)
    w2, b2 = lin(ks[2], ks[3], H1, H2)
    w3, b3 = lin(ks[4], ks[5], H2, NUM_CLASSES)
    return dict(
        w1=w1, b1=b1, g1=jnp.ones((1, H1), jnp.float32), be1=jnp.zeros((1, H1), jnp.float32),
        w2=w2, b2=b2, g2=jnp.ones((1, H2), jnp.float32), be2=jnp.zeros((1, H2), jnp.float32),
        w3=w3, b3=b3,
    )


# ---------------------------------------------------------------------------
# Pure-JAX reference (matches the PyTorch module: training-mode BN, biases in)
# ---------------------------------------------------------------------------
def reference_forward(x, p, matmul_dtype=jnp.float32):
    def mm(a, w):
        return jnp.dot(a.astype(matmul_dtype), w.astype(matmul_dtype),
                       preferred_element_type=jnp.float32)

    def bn(h, g, be):
        mu = jnp.mean(h, axis=0, keepdims=True)
        var = jnp.mean((h - mu) ** 2, axis=0, keepdims=True)
        return (h - mu) / jnp.sqrt(var + EPS) * g + be

    h = jnp.maximum(x, 0.0)
    h1 = mm(h, p["w1"]) + p["b1"]
    h1 = jnp.maximum(bn(h1, p["g1"], p["be1"]), 0.0)
    h2 = mm(h1, p["w2"]) + p["b2"]
    h2 = jnp.maximum(bn(h2, p["g2"], p["be2"]), 0.0)
    logits = mm(h2, p["w3"]) + p["b3"]
    return jax.nn.softmax(logits, axis=1)


if __name__ == "__main__":
    key = jax.random.PRNGKey(0)
    k1, k2, k3, k4 = jax.random.split(key, 4)

    # ---- Case 1: multi-step K grid (F = 1024 tiled as 4 x 256) -------------
    B, F = 8, 1024            # BatchNorm1d training mode needs B > 1
    x = jax.random.normal(k1, (B, F), jnp.float32)
    raw = init_params(k2, F)
    prepared = prepare_params(raw, block_k=256)

    out = food5k_classifier(x, prepared, block_k=256)
    out = jax.block_until_ready(out)
    assert out.shape == (B, NUM_CLASSES)

    ref = reference_forward(x, raw, matmul_dtype=jnp.bfloat16)
    assert jnp.allclose(out, ref, atol=5e-3, rtol=5e-3), "case1: mismatch vs reference"
    assert jnp.allclose(jnp.sum(out, axis=1), 1.0, atol=1e-5), "case1: rows must sum to 1"

    # ---- Case 2: F not a multiple of 128 (exercises K zero-padding) --------
    B2, F2 = 8, 200
    x2 = jax.random.normal(k3, (B2, F2), jnp.float32)
    raw2 = init_params(k4, F2)
    prepared2 = prepare_params(raw2)              # default block_k=2048 -> 1 K step

    out2 = food5k_classifier(x2, prepared2)
    out2 = jax.block_until_ready(out2)
    assert out2.shape == (B2, NUM_CLASSES)

    ref2 = reference_forward(x2, raw2, matmul_dtype=jnp.bfloat16)
    assert jnp.allclose(out2, ref2, atol=5e-3, rtol=5e-3), "case2: mismatch vs reference"
    assert jnp.allclose(jnp.sum(out2, axis=1), 1.0, atol=1e-5), "case2: rows must sum to 1"

    print("KERNEL_OK")
</pallas_src>

<mosaic_0001>
module attributes {stable_mosaic.version = 11 : i64} {
  func.func @classifier_kernel(%arg0: i32, %arg1: memref<8x256xf32, #tpu.memory_space<vmem>>, %arg2: memref<256x512xbf16, #tpu.memory_space<vmem>>, %arg3: memref<1x512xf32, #tpu.memory_space<vmem>>, %arg4: memref<1x512xf32, #tpu.memory_space<vmem>>, %arg5: memref<512x256xbf16, #tpu.memory_space<vmem>>, %arg6: memref<1x256xf32, #tpu.memory_space<vmem>>, %arg7: memref<1x256xf32, #tpu.memory_space<vmem>>, %arg8: memref<256x128xbf16, #tpu.memory_space<vmem>>, %arg9: memref<1x128xf32, #tpu.memory_space<vmem>>, %arg10: memref<8x128xf32, #tpu.memory_space<vmem>>, %arg11: memref<8x512xf32, #tpu.memory_space<vmem>>) attributes {dimension_semantics = [#tpu.dimension_semantics<arbitrary>], iteration_bounds = array<i64: 4>, scalar_prefetch = 0 : i64, scratch_operands = 1 : i64, tpu.core_type = #tpu.core_type<tc>, window_params = [{transform_indices = @transform_0, window_bounds = array<i64: 8, 256>}, {transform_indices = @transform_1, window_bounds = array<i64: 256, 512>}, {pipeline_mode = #tpu.pipeline_mode<synchronous>, transform_indices = @transform_2, window_bounds = array<i64: 1, 512>}, {pipeline_mode = #tpu.pipeline_mode<synchronous>, transform_indices = @transform_3, window_bounds = array<i64: 1, 512>}, {pipeline_mode = #tpu.pipeline_mode<synchronous>, transform_indices = @transform_4, window_bounds = array<i64: 512, 256>}, {pipeline_mode = #tpu.pipeline_mode<synchronous>, transform_indices = @transform_5, window_bounds = array<i64: 1, 256>}, {pipeline_mode = #tpu.pipeline_mode<synchronous>, transform_indices = @transform_6, window_bounds = array<i64: 1, 256>}, {pipeline_mode = #tpu.pipeline_mode<synchronous>, transform_indices = @transform_7, window_bounds = array<i64: 256, 128>}, {pipeline_mode = #tpu.pipeline_mode<synchronous>, transform_indices = @transform_8, window_bounds = array<i64: 1, 128>}, {pipeline_mode = #tpu.pipeline_mode<synchronous>, transform_indices = @transform_9, window_bounds = array<i64: 8, 128>}]} {
    %c0_i32 = arith.constant 0 : i32
    %0 = arith.cmpi eq, %arg0, %c0_i32 : i32
    %1 = arith.extui %0 : i1 to i32
    %c0_i32_0 = arith.constant 0 : i32
    %2 = arith.cmpi ne, %1, %c0_i32_0 : i32
    scf.if %2 {
      %cst_10 = arith.constant 0.000000e+00 : f32
      %15 = vector.broadcast %cst_10 : f32 to vector<8x512xf32>
      %c0_11 = arith.constant 0 : index
      %c0_12 = arith.constant 0 : index
      %16 = vector.load %arg11[%c0_11, %c0_12] : memref<8x512xf32, #tpu.memory_space<vmem>>, vector<8x512xf32>
      tpu.vector_store %arg11[%c0_11, %c0_12], %15 {strides = array<i32>} : memref<8x512xf32, #tpu.memory_space<vmem>>, vector<8x512xf32>,
    } else {
    }
    %c0 = arith.constant 0 : index
    %c0_1 = arith.constant 0 : index
    %3 = vector.load %arg1[%c0, %c0_1] : memref<8x256xf32, #tpu.memory_space<vmem>>, vector<8x256xf32>
    %cst = arith.constant 0.000000e+00 : f32
    %4 = vector.broadcast %cst : f32 to vector<8x256xf32>
    %5 = arith.maximumf %3, %4 : vector<8x256xf32>
    %6 = arith.truncf %5 : vector<8x256xf32> to vector<8x256xbf16>
    %c0_2 = arith.constant 0 : index
    %c0_3 = arith.constant 0 : index
    %7 = vector.load %arg11[%c0_2, %c0_3] : memref<8x512xf32, #tpu.memory_space<vmem>>, vector<8x512xf32>
    %c0_4 = arith.constant 0 : index
    %c0_5 = arith.constant 0 : index
    %8 = vector.load %arg2[%c0_4, %c0_5] : memref<256x512xbf16, #tpu.memory_space<vmem>>, vector<256x512xbf16>
    %cst_6 = arith.constant dense<0.000000e+00> : vector<8x512xf32>
    %9 = tpu.matmul %6, %8, %cst_6 {dimension_numbers = #tpu.dot_dimension_numbers<[1], [0], [0], [1], [0, 0, 1, 1], [], []>} : vector<8x256xbf16>, vector<256x512xbf16>, vector<8x512xf32> -> vector<8x512xf32>
    %10 = arith.addf %7, %9 : vector<8x512xf32>
    %c0_7 = arith.constant 0 : index
    %c0_8 = arith.constant 0 : index
    %11 = vector.load %arg11[%c0_7, %c0_8] : memref<8x512xf32, #tpu.memory_space<vmem>>, vector<8x512xf32>
    tpu.vector_store %arg11[%c0_7, %c0_8], %10 {strides = array<i32>} : memref<8x512xf32, #tpu.memory_space<vmem>>, vector<8x512xf32>,
    %c3_i32 = arith.constant 3 : i32
    %12 = arith.cmpi eq, %arg0, %c3_i32 : i32
    %13 = arith.extui %12 : i1 to i32
    %c0_i32_9 = arith.constant 0 : i32
    %14 = arith.cmpi ne, %13, %c0_i32_9 : i32
    scf.if %14 {
      %c0_10 = arith.constant 0 : index
      %c0_11 = arith.constant 0 : index
      %15 = vector.load %arg11[%c0_10, %c0_11] : memref<8x512xf32, #tpu.memory_space<vmem>>, vector<8x512xf32>
      %cst_12 = arith.constant dense<0.000000e+00> : vector<512xf32>
      %16 = vector.multi_reduction <add>, %15, %cst_12 [0] : vector<8x512xf32> to vector<512xf32>
      %17 = vector.shape_cast %16 : vector<512xf32> to vector<1x512xf32>
      %cst_13 = arith.constant 1.250000e-01 : f32
      %18 = vector.broadcast %cst_13 : f32 to vector<1x512xf32>
      %19 = arith.mulf %17, %18 : vector<1x512xf32>
      %20 = arith.mulf %15, %15 : vector<8x512xf32>
      %cst_14 = arith.constant dense<0.000000e+00> : vector<512xf32>
      %21 = vector.multi_reduction <add>, %20, %cst_14 [0] : vector<8x512xf32> to vector<512xf32>
      %22 = vector.shape_cast %21 : vector<512xf32> to vector<1x512xf32>
      %cst_15 = arith.constant 1.250000e-01 : f32
      %23 = vector.broadcast %cst_15 : f32 to vector<1x512xf32>
      %24 = arith.mulf %22, %23 : vector<1x512xf32>
      %25 = arith.mulf %19, %19 : vector<1x512xf32>
      %26 = arith.subf %24, %25 : vector<1x512xf32>
      %cst_16 = arith.constant 0.000000e+00 : f32
      %27 = vector.broadcast %cst_16 : f32 to vector<1x512xf32>
      %28 = arith.maximumf %26, %27 : vector<1x512xf32>
      %cst_17 = arith.constant 9.99999974E-6 : f32
      %29 = vector.broadcast %cst_17 : f32 to vector<1x512xf32>
      %30 = arith.addf %28, %29 : vector<1x512xf32>
      %31 = math.rsqrt %30 : vector<1x512xf32>
      %c0_18 = arith.constant 0 : index
      %c0_19 = arith.constant 0 : index
      %32 = vector.load %arg3[%c0_18, %c0_19] : memref<1x512xf32, #tpu.memory_space<vmem>>, vector<1x512xf32>
      %33 = arith.mulf %31, %32 : vector<1x512xf32>
      %c0_20 = arith.constant 0 : index
      %c0_21 = arith.constant 0 : index
      %34 = vector.load %arg4[%c0_20, %c0_21] : memref<1x512xf32, #tpu.memory_space<vmem>>, vector<1x512xf32>
      %35 = arith.mulf %19, %33 : vector<1x512xf32>
      %36 = arith.subf %34, %35 : vector<1x512xf32>
      %37 = vector.broadcast %33 : vector<1x512xf32> to vector<8x512xf32>
      %38 = arith.mulf %15, %37 : vector<8x512xf32>
      %39 = vector.broadcast %36 : vector<1x512xf32> to vector<8x512xf32>
      %40 = arith.addf %38, %39 : vector<8x512xf32>
      %cst_22 = arith.constant 0.000000e+00 : f32
      %41 = vector.broadcast %cst_22 : f32 to vector<8x512xf32>
      %42 = arith.maximumf %40, %41 : vector<8x512xf32>
      %43 = arith.truncf %42 : vector<8x512xf32> to vector<8x512xbf16>
      %c0_23 = arith.constant 0 : index
      %c0_24 = arith.constant 0 : index
      %44 = vector.load %arg5[%c0_23, %c0_24] : memref<512x256xbf16, #tpu.memory_space<vmem>>, vector<512x256xbf16>
      %cst_25 = arith.constant dense<0.000000e+00> : vector<8x256xf32>
      %45 = tpu.matmul %43, %44, %cst_25 {dimension_numbers = #tpu.dot_dimension_numbers<[1], [0], [0], [1], [0, 0, 1, 1], [], []>} : vector<8x512xbf16>, vector<512x256xbf16>, vector<8x256xf32> -> vector<8x256xf32>
      %cst_26 = arith.constant dense<0.000000e+00> : vector<256xf32>
      %46 = vector.multi_reduction <add>, %45, %cst_26 [0] : vector<8x256xf32> to vector<256xf32>
      %47 = vector.shape_cast %46 : vector<256xf32> to vector<1x256xf32>
      %cst_27 = arith.constant 1.250000e-01 : f32
      %48 = vector.broadcast %cst_27 : f32 to vector<1x256xf32>
      %49 = arith.mulf %47, %48 : vector<1x256xf32>
      %50 = arith.mulf %45, %45 : vector<8x256xf32>
      %cst_28 = arith.constant dense<0.000000e+00> : vector<256xf32>
      %51 = vector.multi_reduction <add>, %50, %cst_28 [0] : vector<8x256xf32> to vector<256xf32>
      %52 = vector.shape_cast %51 : vector<256xf32> to vector<1x256xf32>
      %cst_29 = arith.constant 1.250000e-01 : f32
      %53 = vector.broadcast %cst_29 : f32 to vector<1x256xf32>
      %54 = arith.mulf %52, %53 : vector<1x256xf32>
      %55 = arith.mulf %49, %49 : vector<1x256xf32>
      %56 = arith.subf %54, %55 : vector<1x256xf32>
      %cst_30 = arith.constant 0.000000e+00 : f32
      %57 = vector.broadcast %cst_30 : f32 to vector<1x256xf32>
      %58 = arith.maximumf %56, %57 : vector<1x256xf32>
      %cst_31 = arith.constant 9.99999974E-6 : f32
      %59 = vector.broadcast %cst_31 : f32 to vector<1x256xf32>
      %60 = arith.addf %58, %59 : vector<1x256xf32>
      %61 = math.rsqrt %60 : vector<1x256xf32>
      %c0_32 = arith.constant 0 : index
      %c0_33 = arith.constant 0 : index
      %62 = vector.load %arg6[%c0_32, %c0_33] : memref<1x256xf32, #tpu.memory_space<vmem>>, vector<1x256xf32>
      %63 = arith.mulf %61, %62 : vector<1x256xf32>
      %c0_34 = arith.constant 0 : index
      %c0_35 = arith.constant 0 : index
      %64 = vector.load %arg7[%c0_34, %c0_35] : memref<1x256xf32, #tpu.memory_space<vmem>>, vector<1x256xf32>
      %65 = arith.mulf %49, %63 : vector<1x256xf32>
      %66 = arith.subf %64, %65 : vector<1x256xf32>
      %67 = vector.broadcast %63 : vector<1x256xf32> to vector<8x256xf32>
      %68 = arith.mulf %45, %67 : vector<8x256xf32>
      %69 = vector.broadcast %66 : vector<1x256xf32> to vector<8x256xf32>
      %70 = arith.addf %68, %69 : vector<8x256xf32>
      %cst_36 = arith.constant 0.000000e+00 : f32
      %71 = vector.broadcast %cst_36 : f32 to vector<8x256xf32>
      %72 = arith.maximumf %70, %71 : vector<8x256xf32>
      %73 = arith.truncf %72 : vector<8x256xf32> to vector<8x256xbf16>
      %c0_37 = arith.constant 0 : index
      %c0_38 = arith.constant 0 : index
      %74 = vector.load %arg8[%c0_37, %c0_38] : memref<256x128xbf16, #tpu.memory_space<vmem>>, vector<256x128xbf16>
      %cst_39 = arith.constant dense<0.000000e+00> : vector<8x128xf32>
      %75 = tpu.matmul %73, %74, %cst_39 {dimension_numbers = #tpu.dot_dimension_numbers<[1], [0], [0], [1], [0, 0, 1, 1], [], []>} : vector<8x256xbf16>, vector<256x128xbf16>, vector<8x128xf32> -> vector<8x128xf32>
      %c0_40 = arith.constant 0 : index
      %c0_41 = arith.constant 0 : index
      %76 = vector.load %arg9[%c0_40, %c0_41] : memref<1x128xf32, #tpu.memory_space<vmem>>, vector<1x128xf32>
      %77 = vector.broadcast %76 : vector<1x128xf32> to vector<8x128xf32>
      %78 = arith.addf %75, %77 : vector<8x128xf32>
      %79 = tpu.iota {dimensions = array<i32: 1>} : vector<8x128xi32>
      %c2_i32 = arith.constant 2 : i32
      %80 = vector.broadcast %c2_i32 : i32 to vector<8x128xi32>
      %81 = arith.cmpi slt, %79, %80 : vector<8x128xi32>
      %cst_42 = arith.constant -1.000000e+30 : f32
      %82 = vector.broadcast %cst_42 : f32 to vector<8x128xf32>
      %83 = arith.select %81, %78, %82 : vector<8x128xi1>, vector<8x128xf32>
      %cst_43 = arith.constant dense<0xFF800000> : vector<8xf32>
      %84 = vector.multi_reduction <maximumf>, %83, %cst_43 [1] : vector<8x128xf32> to vector<8xf32>
      %85 = vector.shape_cast %84 : vector<8xf32> to vector<8x1xf32>
      %86 = vector.broadcast %85 : vector<8x1xf32> to vector<8x128xf32>
      %87 = arith.subf %83, %86 : vector<8x128xf32>
      %88 = math.exp %87 : vector<8x128xf32>
      %cst_44 = arith.constant dense<0.000000e+00> : vector<8xf32>
      %89 = vector.multi_reduction <add>, %88, %cst_44 [1] : vector<8x128xf32> to vector<8xf32>
      %90 = vector.shape_cast %89 : vector<8xf32> to vector<8x1xf32>
      %91 = vector.broadcast %90 : vector<8x1xf32> to vector<8x128xf32>
      %92 = arith.divf %88, %91 : vector<8x128xf32>
      %c0_45 = arith.constant 0 : index
      %c0_46 = arith.constant 0 : index
      %93 = vector.load %arg10[%c0_45, %c0_46] : memref<8x128xf32, #tpu.memory_space<vmem>>, vector<8x128xf32>
      tpu.vector_store %arg10[%c0_45, %c0_46], %92 {strides = array<i32>} : memref<8x128xf32, #tpu.memory_space<vmem>>, vector<8x128xf32>,
    } else {
    }
    return
  }
  func.func @transform_0(%arg0: i32) -> (i32, i32) {
    %c0_i32 = arith.constant 0 : i32
    %c0_i32_0 = arith.constant 0 : i32
    return %c0_i32, %arg0 : i32, i32
  }
  func.func @transform_1(%arg0: i32) -> (i32, i32) {
    %c0_i32 = arith.constant 0 : i32
    %c0_i32_0 = arith.constant 0 : i32
    return %arg0, %c0_i32 : i32, i32
  }
  func.func @transform_2(%arg0: i32) -> (i32, i32) {
    %c0_i32 = arith.constant 0 : i32
    %c0_i32_0 = arith.constant 0 : i32
    %c0_i32_1 = arith.constant 0 : i32
    return %c0_i32, %c0_i32_0 : i32, i32
  }
  func.func @transform_3(%arg0: i32) -> (i32, i32) {
    %c0_i32 = arith.constant 0 : i32
    %c0_i32_0 = arith.constant 0 : i32
    %c0_i32_1 = arith.constant 0 : i32
    return %c0_i32, %c0_i32_0 : i32, i32
  }
  func.func @transform_4(%arg0: i32) -> (i32, i32) {
    %c0_i32 = arith.constant 0 : i32
    %c0_i32_0 = arith.constant 0 : i32
    %c0_i32_1 = arith.constant 0 : i32
    return %c0_i32, %c0_i32_0 : i32, i32
  }
  func.func @transform_5(%arg0: i32) -> (i32, i32) {
    %c0_i32 = arith.constant 0 : i32
    %c0_i32_0 = arith.constant 0 : i32
    %c0_i32_1 = arith.constant 0 : i32
    return %c0_i32, %c0_i32_0 : i32, i32
  }
  func.func @transform_6(%arg0: i32) -> (i32, i32) {
    %c0_i32 = arith.constant 0 : i32
    %c0_i32_0 = arith.constant 0 : i32
    %c0_i32_1 = arith.constant 0 : i32
    return %c0_i32, %c0_i32_0 : i32, i32
  }
  func.func @transform_7(%arg0: i32) -> (i32, i32) {
    %c0_i32 = arith.constant 0 : i32
    %c0_i32_0 = arith.constant 0 : i32
    %c0_i32_1 = arith.constant 0 : i32
    return %c0_i32, %c0_i32_0 : i32, i32
  }
  func.func @transform_8(%arg0: i32) -> (i32, i32) {
    %c0_i32 = arith.constant 0 : i32
    %c0_i32_0 = arith.constant 0 : i32
    %c0_i32_1 = arith.constant 0 : i32
    return %c0_i32, %c0_i32_0 : i32, i32
  }
  func.func @transform_9(%arg0: i32) -> (i32, i32) {
    %c0_i32 = arith.constant 0 : i32
    %c0_i32_0 = arith.constant 0 : i32
    %c0_i32_1 = arith.constant 0 : i32
    return %c0_i32, %c0_i32_0 : i32, i32
  }
}

</mosaic_0001>

<llo_original>
// kernel: food5k_classifier.1
$region0: #{food5k_classifier.1}
  #allocation0 [shape = 'u32[]', space=smem, size = 0x4, offset = 0x4, fixed_abs, tag = 'smem constant byte address 0x4 - core index']
  #allocation1 [shape = 'u32[144,128]{1,0:T(1,128)}', space=vmem, size = 0x12000, scoped, tag = 'internal scratch']
  #allocation2 [shape = 'f32[8,512]{1,0:T(8,128)}', space=vmem, size = 0x4000, scoped, tag = 'scratch operand']
  %s0 = inlined_call_operand.hbm [shape: f32[8,1024], index: 0, kind: input, shape index: {}]
  %s1 = inlined_call_operand.hbm [shape: bf16[1024,512], index: 1, kind: input, shape index: {}]
  %s2 = inlined_call_operand.vmem [shape: f32[1,512], index: 2, kind: input, shape index: {}]
  %s3 = inlined_call_operand.hbm [shape: f32[1,512], index: 3, kind: input, shape index: {}]
  %s4 = inlined_call_operand.hbm [shape: bf16[512,256], index: 4, kind: input, shape index: {}]
  %s5 = inlined_call_operand.vmem [shape: f32[1,256], index: 5, kind: input, shape index: {}]
  %s6 = inlined_call_operand.hbm [shape: f32[1,256], index: 6, kind: input, shape index: {}]
  %s7 = inlined_call_operand.hbm [shape: bf16[256,128], index: 7, kind: input, shape index: {}]
  %s8 = inlined_call_operand.vmem [shape: f32[1,128], index: 8, kind: input, shape index: {}]
  %s9 = inlined_call_operand.vmem [shape: f32[8,128], index: 9, kind: output, shape index: {}]
  %s10 = sld [smem:[#allocation0]]
  $region101: #{food5k_classifier.1} parent=0
    _
  %s12 = ssub.s32 1, %s10
  %s13 = scalar_select 0, %s12, %s10
  $region1: #{food5k_classifier.1} parent=0
    #allocation3 [shape = 'u8[16384]{0}', space=vmem, size = 0x4000, scoped, tag = 'input window, operand 0']
    #allocation4 [shape = 's32[2]{0}', space=sflag, size = 0x8, scoped, tag = 'scoped memory for food5k_classifier.1']
    #allocation5 [shape = 'u8[524288]{0}', space=vmem, size = 0x80000, scoped, tag = 'input window, operand 1']
    #allocation6 [shape = 's32[2]{0}', space=sflag, size = 0x8, scoped, tag = 'scoped memory for food5k_classifier.1']
    #allocation7 [shape = 'u8[2048]{0}', space=vmem, size = 0x800, scoped, tag = 'input window, operand 3, single buffered']
    #allocation8 [shape = 'u8[262144]{0}', space=vmem, size = 0x40000, scoped, tag = 'input window, operand 4, single buffered']
    #allocation9 [shape = 's32[1]{0}', space=sflag, size = 0x4, scoped, tag = 'scoped memory for food5k_classifier.1']
    #allocation10 [shape = 'u8[1024]{0}', space=vmem, size = 0x400, scoped, tag = 'input window, operand 6, single buffered']
    #allocation11 [shape = 'u8[65536]{0}', space=vmem, size = 0x10000, scoped, tag = 'input window, operand 7, single buffered']
    #allocation12 [shape = 's32[1]{0}', space=sflag, size = 0x4, scoped, tag = 'scoped memory for food5k_classifier.1']
    %14 = vsyncpa [#allocation4], 0
    %s15 = scalar_lea.sflag [#allocation4], 1
    %16 = vsyncpa %s15, 0
    %17 = vsyncpa [#allocation6], 0
    %s18 = scalar_lea.sflag [#allocation6], 1
    %19 = vsyncpa %s18, 0
    %20 = vsyncpa [#allocation9], 0
    %21 = vsyncpa [#allocation12], 0
    loop: start=0, step=1, limit=6
    $region2: #{food5k_classifier.1} parent=1 // loop_pre_header
      _
    $region3: #{food5k_classifier.1} parent=1 // loop_header
      %s23 = sphi 0, %s27
      %p24 = scmp.ge.s32.totalorder %s23, 6
      %s33 = sphi 0, %s35
      %s36 = sphi 0, %s33
      %s37 = sphi 0, %s36
      %s53 = sphi 0, %s37
      %s59 = sphi 0, %s61
      %s62 = sphi 0, %s59
      %s63 = sphi 0, %s62
      %s79 = sphi 0, %s63
      %s83 = sphi 0, %s83
      %s85 = sphi 0, %s83
      %s86 = sphi 0, %s85
      %s100 = sphi 0, %s86
      %s104 = sphi 0, %s104
      %s106 = sphi 0, %s104
      %s107 = sphi 0, %s106
      %s121 = sphi 0, %s107
      %s125 = sphi 0, %s125
      %s127 = sphi 0, %s125
      %s128 = sphi 0, %s127
      %s142 = sphi 0, %s128
      %s146 = sphi 0, %s146
      %s148 = sphi 0, %s146
      %s149 = sphi 0, %s148
      %s163 = sphi 0, %s149
      %s167 = sphi 0, %s167
      %s169 = sphi 0, %s167
      %s170 = sphi 0, %s169
      %s184 = sphi 0, %s170
      %s188 = sphi 0, %s188
      %s190 = sphi 0, %s188
      %s191 = sphi 0, %s190
      %s205 = sphi 0, %s191
      %s209 = sphi 0, %s209
      %s211 = sphi 0, %s209
      %s212 = sphi 0, %s211
      %s226 = sphi 0, %s212
      %s230 = sphi 0, %s230
      %s232 = sphi 0, %s230
      %s233 = sphi 0, %s232
      %s247 = sphi 0, %s233
    $region4: #{food5k_classifier.1} parent=1 // loop_header_branch
      %26 = sbr.rel (%p24) target = $region8
    $region5: #{food5k_classifier.1} parent=1 // loop_body
      %s28 = ssub.s32 %s23, 1
      %s29 = ssub.s32 %s23, 2
      %s30 = sadd.s32 %s23, 1
      %s31 = ssub.s32 %s23, %s30
      %p32 = scmp.eq.s32.totalorder %s31, 0
      %s34 = sadd.s32 %s33, 1
      %s35 = scalar_select %p32, %s33, %s34
      %p38 = pneg %p32
      %p39 = scmp.eq.s32.totalorder %s23, 3
      %p40 = por %p38, %p39
      %p41 = scmp.ne.s32.totalorder %s33, %s36
      %p42 = scmp.eq.s32.totalorder %s23, 0
      %p43 = por %p41, %p42
      %p44 = scmp.ne.s32.totalorder %s33, %s36
      %p45 = scmp.eq.s32.totalorder %s28, 3
      %p46 = por %p44, %p45
      %p47 = scmp.ne.s32.totalorder %s36, %s37
      %p48 = scmp.eq.s32.totalorder %s28, 0
      %p49 = por %p47, %p48
      %p50 = scmp.ne.s32.totalorder %s36, %s37
      %p51 = scmp.eq.s32.totalorder %s29, 3
      %p52 = por %p50, %p51
      %p54 = scmp.ne.s32.totalorder %s37, %s53
      %p55 = scmp.eq.s32.totalorder %s29, 0
      %p56 = por %p54, %p55
      %s57 = ssub.s32 %s23, %s30
      %p58 = scmp.eq.s32.totalorder %s57, 0
      %s60 = sadd.s32 %s59, 1
      %s61 = scalar_select %p58, %s59, %s60
      %p64 = pneg %p58
      %p65 = scmp.eq.s32.totalorder %s23, 3
      %p66 = por %p64, %p65
      %p67 = scmp.ne.s32.totalorder %s59, %s62
      %p68 = scmp.eq.s32.totalorder %s23, 0
      %p69 = por %p67, %p68
      %p70 = scmp.ne.s32.totalorder %s59, %s62
      %p71 = scmp.eq.s32.totalorder %s28, 3
      %p72 = por %p70, %p71
      %p73 = scmp.ne.s32.totalorder %s62, %s63
      %p74 = scmp.eq.s32.totalorder %s28, 0
      %p75 = por %p73, %p74
      %p76 = scmp.ne.s32.totalorder %s62, %s63
      %p77 = scmp.eq.s32.totalorder %s29, 3
      %p78 = por %p76, %p77
      %p80 = scmp.ne.s32.totalorder %s63, %s79
      %p81 = scmp.eq.s32.totalorder %s29, 0
      %p82 = por %p80, %p81
      %s84 = sadd.s32 %s83, 1
      %p87 = scmp.eq.s32.totalorder %s23, 3
      %p88 = scmp.ne.s32.totalorder %s83, %s85
      %p89 = scmp.eq.s32.totalorder %s23, 0
      %p90 = por %p88, %p89
      %p91 = scmp.ne.s32.totalorder %s83, %s85
      %p92 = scmp.eq.s32.totalorder %s28, 3
      %p93 = por %p91, %p92
      %p94 = scmp.ne.s32.totalorder %s85, %s86
      %p95 = scmp.eq.s32.totalorder %s28, 0
      %p96 = por %p94, %p95
      %p97 = scmp.ne.s32.totalorder %s85, %s86
      %p98 = scmp.eq.s32.totalorder %s29, 3
      %p99 = por %p97, %p98
      %p101 = scmp.ne.s32.totalorder %s86, %s100
      %p102 = scmp.eq.s32.totalorder %s29, 0
      %p103 = por %p101, %p102
      %s105 = sadd.s32 %s104, 1
      %p108 = scmp.eq.s32.totalorder %s23, 3
      %p109 = scmp.ne.s32.totalorder %s104, %s106
      %p110 = scmp.eq.s32.totalorder %s23, 0
      %p111 = por %p109, %p110
      %p112 = scmp.ne.s32.totalorder %s104, %s106
      %p113 = scmp.eq.s32.totalorder %s28, 3
      %p114 = por %p112, %p113
      %p115 = scmp.ne.s32.totalorder %s106, %s107
      %p116 = scmp.eq.s32.totalorder %s28, 0
      %p117 = por %p115, %p116
      %p118 = scmp.ne.s32.totalorder %s106, %s107
      %p119 = scmp.eq.s32.totalorder %s29, 3
      %p120 = por %p118, %p119
      %p122 = scmp.ne.s32.totalorder %s107, %s121
      %p123 = scmp.eq.s32.totalorder %s29, 0
      %p124 = por %p122, %p123
      %s126 = sadd.s32 %s125, 1
      %p129 = scmp.eq.s32.totalorder %s23, 3
      %p130 = scmp.ne.s32.totalorder %s125, %s127
      %p131 = scmp.eq.s32.totalorder %s23, 0
      %p132 = por %p130, %p131
      %p133 = scmp.ne.s32.totalorder %s125, %s127
      %p134 = scmp.eq.s32.totalorder %s28, 3
      %p135 = por %p133, %p134
      %p136 = scmp.ne.s32.totalorder %s127, %s128
      %p137 = scmp.eq.s32.totalorder %s28, 0
      %p138 = por %p136, %p137
      %p139 = scmp.ne.s32.totalorder %s127, %s128
      %p140 = scmp.eq.s32.totalorder %s29, 3
      %p141 = por %p139, %p140
      %p143 = scmp.ne.s32.totalorder %s128, %s142
      %p144 = scmp.eq.s32.totalorder %s29, 0
      %p145 = por %p143, %p144
      %s147 = sadd.s32 %s146, 1
      %p150 = scmp.eq.s32.totalorder %s23, 3
      %p151 = scmp.ne.s32.totalorder %s146, %s148
      %p152 = scmp.eq.s32.totalorder %s23, 0
      %p153 = por %p151, %p152
      %p154 = scmp.ne.s32.totalorder %s146, %s148
      %p155 = scmp.eq.s32.totalorder %s28, 3
      %p156 = por %p154, %p155
      %p157 = scmp.ne.s32.totalorder %s148, %s149
      %p158 = scmp.eq.s32.totalorder %s28, 0
      %p159 = por %p157, %p158
      %p160 = scmp.ne.s32.totalorder %s148, %s149
      %p161 = scmp.eq.s32.totalorder %s29, 3
      %p162 = por %p160, %p161
      %p164 = scmp.ne.s32.totalorder %s149, %s163
      %p165 = scmp.eq.s32.totalorder %s29, 0
      %p166 = por %p164, %p165
      %s168 = sadd.s32 %s167, 1
      %p171 = scmp.eq.s32.totalorder %s23, 3
      %p172 = scmp.ne.s32.totalorder %s167, %s169
      %p173 = scmp.eq.s32.totalorder %s23, 0
      %p174 = por %p172, %p173
      %p175 = scmp.ne.s32.totalorder %s167, %s169
      %p176 = scmp.eq.s32.totalorder %s28, 3
      %p177 = por %p175, %p176
      %p178 = scmp.ne.s32.totalorder %s169, %s170
      %p179 = scmp.eq.s32.totalorder %s28, 0
      %p180 = por %p178, %p179
      %p181 = scmp.ne.s32.totalorder %s169, %s170
      %p182 = scmp.eq.s32.totalorder %s29, 3
      %p183 = por %p181, %p182
      %p185 = scmp.ne.s32.totalorder %s170, %s184
      %p186 = scmp.eq.s32.totalorder %s29, 0
      %p187 = por %p185, %p186
      %s189 = sadd.s32 %s188, 1
      %p192 = scmp.eq.s32.totalorder %s23, 3
      %p193 = scmp.ne.s32.totalorder %s188, %s190
      %p194 = scmp.eq.s32.totalorder %s23, 0
      %p195 = por %p193, %p194
      %p196 = scmp.ne.s32.totalorder %s188, %s190
      %p197 = scmp.eq.s32.totalorder %s28, 3
      %p198 = por %p196, %p197
      %p199 = scmp.ne.s32.totalorder %s190, %s191
      %p200 = scmp.eq.s32.totalorder %s28, 0
      %p201 = por %p199, %p200
      %p202 = scmp.ne.s32.totalorder %s190, %s191
      %p203 = scmp.eq.s32.totalorder %s29, 3
      %p204 = por %p202, %p203
      %p206 = scmp.ne.s32.totalorder %s191, %s205
      %p207 = scmp.eq.s32.totalorder %s29, 0
      %p208 = por %p206, %p207
      %s210 = sadd.s32 %s209, 1
      %p213 = scmp.eq.s32.totalorder %s23, 3
      %p214 = scmp.ne.s32.totalorder %s209, %s211
      %p215 = scmp.eq.s32.totalorder %s23, 0
      %p216 = por %p214, %p215
      %p217 = scmp.ne.s32.totalorder %s209, %s211
      %p218 = scmp.eq.s32.totalorder %s28, 3
      %p219 = por %p217, %p218
      %p220 = scmp.ne.s32.totalorder %s211, %s212
      %p221 = scmp.eq.s32.totalorder %s28, 0
      %p222 = por %p220, %p221
      %p223 = scmp.ne.s32.totalorder %s211, %s212
      %p224 = scmp.eq.s32.totalorder %s29, 3
      %p225 = por %p223, %p224
      %p227 = scmp.ne.s32.totalorder %s212, %s226
      %p228 = scmp.eq.s32.totalorder %s29, 0
      %p229 = por %p227, %p228
      %s231 = sadd.s32 %s230, 1
      %p234 = scmp.eq.s32.totalorder %s23, 3
      %p235 = scmp.ne.s32.totalorder %s230, %s232
      %p236 = scmp.eq.s32.totalorder %s23, 0
      %p237 = por %p235, %p236
      %p238 = scmp.ne.s32.totalorder %s230, %s232
      %p239 = scmp.eq.s32.totalorder %s28, 3
      %p240 = por %p238, %p239
      %p241 = scmp.ne.s32.totalorder %s232, %s233
      %p242 = scmp.eq.s32.totalorder %s28, 0
      %p243 = por %p241, %p242
      %p244 = scmp.ne.s32.totalorder %s232, %s233
      %p245 = scmp.eq.s32.totalorder %s29, 3
      %p246 = por %p244, %p245
      %p248 = scmp.ne.s32.totalorder %s233, %s247
      %p249 = scmp.eq.s32.totalorder %s29, 0
      %p250 = por %p248, %p249
      %p251 = scmp.le.s32.totalorder 1, %s23
      %p252 = scmp.lt.s32.totalorder %s23, 5
      %p253 = pnand %p251, %p252
      %p254 = pneg %p253
      // Predicated region
      $region9: #{food5k_classifier.1} parent=5 // pred_check
        _
      $region10: #{food5k_classifier.1} parent=5 // pred_check_branch
        %256 = sbr.rel (%p253) target = $region12
      $region11: #{food5k_classifier.1} parent=5 // pred_region
        %s257 = ssub.s32 %s23, 1
        // Predicated region
        $region13: #{food5k_classifier.1} parent=11 // pred_check
          %p258 = pneg %p96
        $region14: #{food5k_classifier.1} parent=11 // pred_check_branch
          %260 = sbr.rel (%p258) target = $region16
        $region15: #{food5k_classifier.1} parent=11 // pred_region
          _
        $region16: #{food5k_classifier.1} parent=11 // pred_fallthru
          _
        // Predicated region
        $region17: #{food5k_classifier.1} parent=11 // pred_check
          %p261 = pneg %p117
        $region18: #{food5k_classifier.1} parent=11 // pred_check_branch
          %263 = sbr.rel (%p261) target = $region20
        $region19: #{food5k_classifier.1} parent=11 // pred_region
          %s265 = ssub.s32 64, 64
          %266 = vsyncadd [#allocation6], %s265
          %s268 = sshll.u32 [#allocation7], 4
          %s269 = int_to_ptr.vmem [resolvable:$true] %s268
          %271 = dma.hbm_to_vmem [thread:$0]  %s3, 64, %s269, [#allocation6]
        $region20: #{food5k_classifier.1} parent=11 // pred_fallthru
          _
        // Predicated region
        $region21: #{food5k_classifier.1} parent=11 // pred_check
          %p272 = pneg %p138
        $region22: #{food5k_classifier.1} parent=11 // pred_check_branch
          %274 = sbr.rel (%p272) target = $region24
        $region23: #{food5k_classifier.1} parent=11 // pred_region
          %s276 = ssub.s32 8192, 8192
          %277 = vsyncadd [#allocation9], %s276
          %s278 = sshll.u32 [#allocation8], 4
          %s279 = int_to_ptr.vmem [resolvable:$true] %s278
          %284 = dma.hbm_to_vmem [thread:$0]  %s4, 8192, %s279, [#allocation9], 128, 128, 8
        $region24: #{food5k_classifier.1} parent=11 // pred_fallthru
          _
        // Predicated region
        $region25: #{food5k_classifier.1} parent=11 // pred_check
          %p285 = pneg %p159
        $region26: #{food5k_classifier.1} parent=11 // pred_check_branch
          %287 = sbr.rel (%p285) target = $region28
        $region27: #{food5k_classifier.1} parent=11 // pred_region
          _
        $region28: #{food5k_classifier.1} parent=11 // pred_fallthru
          _
        // Predicated region
        $region29: #{food5k_classifier.1} parent=11 // pred_check
          %p288 = pneg %p180
        $region30: #{food5k_classifier.1} parent=11 // pred_check_branch
          %290 = sbr.rel (%p288) target = $region32
        $region31: #{food5k_classifier.1} parent=11 // pred_region
          %s292 = ssub.s32 32, 32
          %293 = vsyncadd [#allocation9], %s292
          %s295 = sshll.u32 [#allocation10], 4
          %s296 = int_to_ptr.vmem [resolvable:$true] %s295
          %298 = dma.hbm_to_vmem [thread:$0]  %s6, 32, %s296, [#allocation9]
        $region32: #{food5k_classifier.1} parent=11 // pred_fallthru
          _
        // Predicated region
        $region33: #{food5k_classifier.1} parent=11 // pred_check
          %p299 = pneg %p201
        $region34: #{food5k_classifier.1} parent=11 // pred_check_branch
          %301 = sbr.rel (%p299) target = $region36
        $region35: #{food5k_classifier.1} parent=11 // pred_region
          %s303 = ssub.s32 2048, 2048
          %304 = vsyncadd [#allocation12], %s303
          %s305 = sshll.u32 [#allocation11], 4
          %s306 = int_to_ptr.vmem [resolvable:$true] %s305
          %311 = dma.hbm_to_vmem [thread:$0]  %s7, 2048, %s306, [#allocation12], 64, 64, 4
        $region36: #{food5k_classifier.1} parent=11 // pred_fallthru
          _
        // Predicated region
        $region37: #{food5k_classifier.1} parent=11 // pred_check
          %p312 = pneg %p222
        $region38: #{food5k_classifier.1} parent=11 // pred_check_branch
          %314 = sbr.rel (%p312) target = $region40
        $region39: #{food5k_classifier.1} parent=11 // pred_region
          _
        $region40: #{food5k_classifier.1} parent=11 // pred_fallthru
          _
      $region12: #{food5k_classifier.1} parent=5 // pred_fallthru
        _
      %p315 = scmp.lt.s32.totalorder %s23, 4
      // Predicated region
      $region41: #{food5k_classifier.1} parent=5 // pred_check
        %p316 = pneg %p315
      $region42: #{food5k_classifier.1} parent=5 // pred_check_branch
        %318 = sbr.rel (%p316) target = $region44
      $region43: #{food5k_classifier.1} parent=5 // pred_region
        // Predicated region
        $region45: #{food5k_classifier.1} parent=43 // pred_check
          %p319 = pneg %p43
        $region46: #{food5k_classifier.1} parent=43 // pred_check_branch
          %321 = sbr.rel (%p319) target = $region48
        $region47: #{food5k_classifier.1} parent=43 // pred_region
          %s322 = sand.u32 %s33, 1
          %s323 = scalar_lea.sflag [#allocation4], %s322
          %s324 = sand.u32 %s33, 1
          %s325 = smul.addr %s324, 16
          %s326 = scalar_lea.vmem [#allocation3], %s325
          %s327 = smul.u32 2, %s23
          %s329 = ssub.s32 256, 256
          %330 = vsyncadd %s323, %s329
          %s331 = smul.addr %s327, 128
          %s332 = scalar_lea.hbm %s0, %s331
          %s334 = sshll.u32 %s326, 4
          %s335 = int_to_ptr.vmem [resolvable:$true] %s334
          %337 = dma.hbm_to_vmem [thread:$0]  %s332, 256, %s335, %s323
        $region48: #{food5k_classifier.1} parent=43 // pred_fallthru
          _
        // Predicated region
        $region49: #{food5k_classifier.1} parent=43 // pred_check
          %p338 = pneg %p69
        $region50: #{food5k_classifier.1} parent=43 // pred_check_branch
          %340 = sbr.rel (%p338) target = $region52
        $region51: #{food5k_classifier.1} parent=43 // pred_region
          %s341 = sand.u32 %s23, 1
          %s342 = scalar_lea.sflag [#allocation6], %s341
          %s343 = sand.u32 %s59, 1
          %s344 = smul.addr %s343, 512
          %s345 = scalar_lea.vmem [#allocation5], %s344
          %s346 = smul.u32 32, %s23
          %s348 = ssub.s32 8192, 8192
          %349 = vsyncadd %s342, %s348
          %s350 = smul.addr %s346, 4
          %s351 = smul.addr %s350, 64
          %s352 = scalar_lea.hbm %s1, %s351
          %s353 = sshll.u32 %s345, 4
          %s354 = int_to_ptr.vmem [resolvable:$true] %s353
          %359 = dma.hbm_to_vmem [thread:$0]  %s352, 8192, %s354, %s342, 256, 256, 16
        $region52: #{food5k_classifier.1} parent=43 // pred_fallthru
          _
      $region44: #{food5k_classifier.1} parent=5 // pred_fallthru
        _
      %p360 = scmp.le.s32.totalorder 1, %s23
      %p361 = scmp.lt.s32.totalorder %s23, 5
      %p362 = pnand %p360, %p361
      %p363 = pneg %p362
      // Predicated region
      $region53: #{food5k_classifier.1} parent=5 // pred_check
        _
      $region54: #{food5k_classifier.1} parent=5 // pred_check_branch
        %365 = sbr.rel (%p362) target = $region56
      $region55: #{food5k_classifier.1} parent=5 // pred_region
        %s366 = ssub.s32 %s23, 1
        %s367 = sand.u32 %s36, 1
        %s368 = scalar_lea.sflag [#allocation4], %s367
        %s369 = sand.u32 %s36, 1
        %s370 = smul.addr %s369, 16
        %s371 = scalar_lea.vmem [#allocation3], %s370
        // Predicated region
        $region57: #{food5k_classifier.1} parent=55 // pred_check
          %p372 = pneg %p49
        $region58: #{food5k_classifier.1} parent=55 // pred_check_branch
          %374 = sbr.rel (%p372) target = $region60
        $region59: #{food5k_classifier.1} parent=55 // pred_region
          %375 = dma.done %s368, 256
        $region60: #{food5k_classifier.1} parent=55 // pred_fallthru
          _
        %s376 = sand.u32 %s28, 1
        %s377 = scalar_lea.sflag [#allocation6], %s376
        %s378 = sand.u32 %s62, 1
        %s379 = smul.addr %s378, 512
        %s380 = scalar_lea.vmem [#allocation5], %s379
        // Predicated region
        $region61: #{food5k_classifier.1} parent=55 // pred_check
          %p381 = pneg %p75
        $region62: #{food5k_classifier.1} parent=55 // pred_check_branch
          %383 = sbr.rel (%p381) target = $region64
        $region63: #{food5k_classifier.1} parent=55 // pred_region
          %384 = dma.done %s377, 8192
        $region64: #{food5k_classifier.1} parent=55 // pred_fallthru
          _
        // Predicated region
        $region65: #{food5k_classifier.1} parent=55 // pred_check
          %p385 = pneg %p117
        $region66: #{food5k_classifier.1} parent=55 // pred_check_branch
          %387 = sbr.rel (%p385) target = $region68
        $region67: #{food5k_classifier.1} parent=55 // pred_region
          %388 = dma.done [#allocation6], 64
        $region68: #{food5k_classifier.1} parent=55 // pred_fallthru
          _
        // Predicated region
        $region69: #{food5k_classifier.1} parent=55 // pred_check
          %p389 = pneg %p138
        $region70: #{food5k_classifier.1} parent=55 // pred_check_branch
          %391 = sbr.rel (%p389) target = $region72
        $region71: #{food5k_classifier.1} parent=55 // pred_region
          %392 = dma.done [#allocation9], 8192
        $region72: #{food5k_classifier.1} parent=55 // pred_fallthru
          _
        // Predicated region
        $region73: #{food5k_classifier.1} parent=55 // pred_check
          %p393 = pneg %p180
        $region74: #{food5k_classifier.1} parent=55 // pred_check_branch
          %395 = sbr.rel (%p393) target = $region76
        $region75: #{food5k_classifier.1} parent=55 // pred_region
          %396 = dma.done [#allocation9], 32
        $region76: #{food5k_classifier.1} parent=55 // pred_fallthru
          _
        // Predicated region
        $region77: #{food5k_classifier.1} parent=55 // pred_check
          %p397 = pneg %p201
        $region78: #{food5k_classifier.1} parent=55 // pred_check_branch
          %399 = sbr.rel (%p397) target = $region80
        $region79: #{food5k_classifier.1} parent=55 // pred_region
          %400 = dma.done [#allocation12], 2048
        $region80: #{food5k_classifier.1} parent=55 // pred_fallthru
          _
        %s401 = sand.u32 %s36, 1
        %s402 = scalar_lea.sflag [#allocation4], %s401
        %s403 = sand.u32 %s36, 1
        %s404 = smul.addr %s403, 16
        %s405 = scalar_lea.vmem [#allocation3], %s404
        %p406 = pneg %p49
        %p407 = pneg %p46
        %s408 = sand.u32 %s28, 1
        %s409 = scalar_lea.sflag [#allocation6], %s408
        %s410 = sand.u32 %s62, 1
        %s411 = smul.addr %s410, 512
        %s412 = scalar_lea.vmem [#allocation5], %s411
        %p413 = pneg %p75
        %p414 = pneg %p72
        %p415 = pneg %p96
        %p416 = pneg %p93
        %p417 = pneg %p117
        %p418 = pneg %p114
        %p419 = pneg %p138
        %p420 = pneg %p135
        %p421 = pneg %p159
        %p422 = pneg %p156
        %p423 = pneg %p180
        %p424 = pneg %p177
        %p425 = pneg %p201
        %p426 = pneg %p198
        %p427 = pneg %p222
        %p428 = pneg %p219
        %p429 = pneg %p243
        %p430 = pneg %p240
        %s431 = smul.u32 2, %s28
        %s432 = smul.u32 32, %s28
        %p434 = scmp.eq.s32.totalorder %s28, 0
        // Predicated region
        $region81: #{food5k_classifier.1} parent=55 // pred_check
          %p435 = pneg %p434
        $region82: #{food5k_classifier.1} parent=55 // pred_check_branch
          %437 = sbr.rel (%p435) target = $region84
        $region83: #{food5k_classifier.1} parent=55 // pred_region
          %438 = vst [vmem:[#allocation2] sm:$0xff] 0.0
          %439 = vst [vmem:[#allocation2 + $0x8] sm:$0xff] 0.0
          %440 = vst [vmem:[#allocation2 + $0x10] sm:$0xff] 0.0
          %441 = vst [vmem:[#allocation2 + $0x18] sm:$0xff] 0.0
        $region84: #{food5k_classifier.1} parent=55 // pred_fallthru
          _
        %v442 = vld [vmem:[%s371] sm:$0xff]
        %v443 = vld [vmem:[%s371 + $0x8] sm:$0xff]
        %v444 = vmax.f32 %v442, 0.0
        %v445 = vmax.f32 %v443, 0.0
        %v446 = vpack.c.bf16 %v444, %v444
        %v447 = vpack.c.bf16 %v445, %v445
        %v448 = vld [vmem:[#allocation2] sm:$0xff]
        %v449 = vld [vmem:[#allocation2 + $0x8] sm:$0xff]
        %v450 = vld [vmem:[#allocation2 + $0x10] sm:$0xff]
        %v451 = vld [vmem:[#allocation2 + $0x18] sm:$0xff]
        %v452 = vld [vmem:[%s380] sm:$0xff]
        %v453 = vld [vmem:[%s380 + $0x8] sm:$0xff]
        %v454 = vld [vmem:[%s380 + $0x10] sm:$0xff]
        %v455 = vld [vmem:[%s380 + $0x18] sm:$0xff]
        %v456 = vld [vmem:[%s380 + $0x20] sm:$0xff]
        %v457 = vld [vmem:[%s380 + $0x28] sm:$0xff]
        %v458 = vld [vmem:[%s380 + $0x30] sm:$0xff]
        %v459 = vld [vmem:[%s380 + $0x38] sm:$0xff]
        %v460 = vld [vmem:[%s380 + $0x40] sm:$0xff]
        %v461 = vld [vmem:[%s380 + $0x48] sm:$0xff]
        %v462 = vld [vmem:[%s380 + $0x50] sm:$0xff]
        %v463 = vld [vmem:[%s380 + $0x58] sm:$0xff]
        %v464 = vld [vmem:[%s380 + $0x60] sm:$0xff]
        %v465 = vld [vmem:[%s380 + $0x68] sm:$0xff]
        %v466 = vld [vmem:[%s380 + $0x70] sm:$0xff]
        %v467 = vld [vmem:[%s380 + $0x78] sm:$0xff]
        %v468 = vld [vmem:[%s380 + $0x80] sm:$0xff]
        %v469 = vld [vmem:[%s380 + $0x88] sm:$0xff]
        %v470 = vld [vmem:[%s380 + $0x90] sm:$0xff]
        %v471 = vld [vmem:[%s380 + $0x98] sm:$0xff]
        %v472 = vld [vmem:[%s380 + $0xa0] sm:$0xff]
        %v473 = vld [vmem:[%s380 + $0xa8] sm:$0xff]
        %v474 = vld [vmem:[%s380 + $0xb0] sm:$0xff]
        %v475 = vld [vmem:[%s380 + $0xb8] sm:$0xff]
        %v476 = vld [vmem:[%s380 + $0xc0] sm:$0xff]
        %v477 = vld [vmem:[%s380 + $0xc8] sm:$0xff]
        %v478 = vld [vmem:[%s380 + $0xd0] sm:$0xff]
        %v479 = vld [vmem:[%s380 + $0xd8] sm:$0xff]
        %v480 = vld [vmem:[%s380 + $0xe0] sm:$0xff]
        %v481 = vld [vmem:[%s380 + $0xe8] sm:$0xff]
        %v482 = vld [vmem:[%s380 + $0xf0] sm:$0xff]
        %v483 = vld [vmem:[%s380 + $0xf8] sm:$0xff]
        %v484 = vld [vmem:[%s380 + $0x100] sm:$0xff]
        %v485 = vld [vmem:[%s380 + $0x108] sm:$0xff]
        %v486 = vld [vmem:[%s380 + $0x110] sm:$0xff]
        %v487 = vld [vmem:[%s380 + $0x118] sm:$0xff]
        %v488 = vld [vmem:[%s380 + $0x120] sm:$0xff]
        %v489 = vld [vmem:[%s380 + $0x128] sm:$0xff]
        %v490 = vld [vmem:[%s380 + $0x130] sm:$0xff]
        %v491 = vld [vmem:[%s380 + $0x138] sm:$0xff]
        %v492 = vld [vmem:[%s380 + $0x140] sm:$0xff]
        %v493 = vld [vmem:[%s380 + $0x148] sm:$0xff]
        %v494 = vld [vmem:[%s380 + $0x150] sm:$0xff]
        %v495 = vld [vmem:[%s380 + $0x158] sm:$0xff]
        %v496 = vld [vmem:[%s380 + $0x160] sm:$0xff]
        %v497 = vld [vmem:[%s380 + $0x168] sm:$0xff]
        %v498 = vld [vmem:[%s380 + $0x170] sm:$0xff]
        %v499 = vld [vmem:[%s380 + $0x178] sm:$0xff]
        %v500 = vld [vmem:[%s380 + $0x180] sm:$0xff]
        %v501 = vld [vmem:[%s380 + $0x188] sm:$0xff]
        %v502 = vld [vmem:[%s380 + $0x190] sm:$0xff]
        %v503 = vld [vmem:[%s380 + $0x198] sm:$0xff]
        %v504 = vld [vmem:[%s380 + $0x1a0] sm:$0xff]
        %v505 = vld [vmem:[%s380 + $0x1a8] sm:$0xff]
        %v506 = vld [vmem:[%s380 + $0x1b0] sm:$0xff]
        %v507 = vld [vmem:[%s380 + $0x1b8] sm:$0xff]
        %v508 = vld [vmem:[%s380 + $0x1c0] sm:$0xff]
        %v509 = vld [vmem:[%s380 + $0x1c8] sm:$0xff]
        %v510 = vld [vmem:[%s380 + $0x1d0] sm:$0xff]
        %v511 = vld [vmem:[%s380 + $0x1d8] sm:$0xff]
        %v512 = vld [vmem:[%s380 + $0x1e0] sm:$0xff]
        %v513 = vld [vmem:[%s380 + $0x1e8] sm:$0xff]
        %v514 = vld [vmem:[%s380 + $0x1f0] sm:$0xff]
        %v515 = vld [vmem:[%s380 + $0x1f8] sm:$0xff]
        %v580 = vunpack.c.l.b16 %v452
        %v581 = vunpack.c.h.b16 %v452
        %v582 = vunpack.c.l.b16 %v453
        %v583 = vunpack.c.h.b16 %v453
        %v584 = vunpack.c.l.b16 %v454
        %v585 = vunpack.c.h.b16 %v454
        %v586 = vunpack.c.l.b16 %v455
        %v587 = vunpack.c.h.b16 %v455
        %v588 = vunpack.c.l.b16 %v456
        %v589 = vunpack.c.h.b16 %v456
        %v590 = vunpack.c.l.b16 %v457
        %v591 = vunpack.c.h.b16 %v457
        %v592 = vunpack.c.l.b16 %v458
        %v593 = vunpack.c.h.b16 %v458
        %v594 = vunpack.c.l.b16 %v459
        %v595 = vunpack.c.h.b16 %v459
        %v596 = vunpack.c.l.b16 %v460
        %v597 = vunpack.c.h.b16 %v460
        %v598 = vunpack.c.l.b16 %v461
        %v599 = vunpack.c.h.b16 %v461
        %v600 = vunpack.c.l.b16 %v462
        %v601 = vunpack.c.h.b16 %v462
        %v602 = vunpack.c.l.b16 %v463
        %v603 = vunpack.c.h.b16 %v463
        %v604 = vunpack.c.l.b16 %v464
        %v605 = vunpack.c.h.b16 %v464
        %v606 = vunpack.c.l.b16 %v465
        %v607 = vunpack.c.h.b16 %v465
        %v608 = vunpack.c.l.b16 %v466
        %v609 = vunpack.c.h.b16 %v466
        %v610 = vunpack.c.l.b16 %v467
        %v611 = vunpack.c.h.b16 %v467
        %v612 = vunpack.c.l.b16 %v468
        %v613 = vunpack.c.h.b16 %v468
        %v614 = vunpack.c.l.b16 %v469
        %v615 = vunpack.c.h.b16 %v469
        %v616 = vunpack.c.l.b16 %v470
        %v617 = vunpack.c.h.b16 %v470
        %v618 = vunpack.c.l.b16 %v471
        %v619 = vunpack.c.h.b16 %v471
        %v620 = vunpack.c.l.b16 %v472
        %v621 = vunpack.c.h.b16 %v472
        %v622 = vunpack.c.l.b16 %v473
        %v623 = vunpack.c.h.b16 %v473
        %v624 = vunpack.c.l.b16 %v474
        %v625 = vunpack.c.h.b16 %v474
        %v626 = vunpack.c.l.b16 %v475
        %v627 = vunpack.c.h.b16 %v475
        %v628 = vunpack.c.l.b16 %v476
        %v629 = vunpack.c.h.b16 %v476
        %v630 = vunpack.c.l.b16 %v477
        %v631 = vunpack.c.h.b16 %v477
        %v632 = vunpack.c.l.b16 %v478
        %v633 = vunpack.c.h.b16 %v478
        %v634 = vunpack.c.l.b16 %v479
        %v635 = vunpack.c.h.b16 %v479
        %v636 = vunpack.c.l.b16 %v480
        %v637 = vunpack.c.h.b16 %v480
        %v638 = vunpack.c.l.b16 %v481
        %v639 = vunpack.c.h.b16 %v481
        %v640 = vunpack.c.l.b16 %v482
        %v641 = vunpack.c.h.b16 %v482
        %v642 = vunpack.c.l.b16 %v483
        %v643 = vunpack.c.h.b16 %v483
        %v644 = vunpack.c.l.b16 %v484
        %v645 = vunpack.c.h.b16 %v484
        %v646 = vunpack.c.l.b16 %v485
        %v647 = vunpack.c.h.b16 %v485
        %v648 = vunpack.c.l.b16 %v486
        %v649 = vunpack.c.h.b16 %v486
        %v650 = vunpack.c.l.b16 %v487
        %v651 = vunpack.c.h.b16 %v487
        %v652 = vunpack.c.l.b16 %v488
        %v653 = vunpack.c.h.b16 %v488
        %v654 = vunpack.c.l.b16 %v489
        %v655 = vunpack.c.h.b16 %v489
        %v656 = vunpack.c.l.b16 %v490
        %v657 = vunpack.c.h.b16 %v490
        %v658 = vunpack.c.l.b16 %v491
        %v659 = vunpack.c.h.b16 %v491
        %v660 = vunpack.c.l.b16 %v492
        %v661 = vunpack.c.h.b16 %v492
        %v662 = vunpack.c.l.b16 %v493
        %v663 = vunpack.c.h.b16 %v493
        %v664 = vunpack.c.l.b16 %v494
        %v665 = vunpack.c.h.b16 %v494
        %v666 = vunpack.c.l.b16 %v495
        %v667 = vunpack.c.h.b16 %v495
        %v668 = vunpack.c.l.b16 %v496
        %v669 = vunpack.c.h.b16 %v496
        %v670 = vunpack.c.l.b16 %v497
        %v671 = vunpack.c.h.b16 %v497
        %v672 = vunpack.c.l.b16 %v498
        %v673 = vunpack.c.h.b16 %v498
        %v674 = vunpack.c.l.b16 %v499
        %v675 = vunpack.c.h.b16 %v499
        %v676 = vunpack.c.l.b16 %v500
        %v677 = vunpack.c.h.b16 %v500
        %v678 = vunpack.c.l.b16 %v501
        %v679 = vunpack.c.h.b16 %v501
        %v680 = vunpack.c.l.b16 %v502
        %v681 = vunpack.c.h.b16 %v502
        %v682 = vunpack.c.l.b16 %v503
        %v683 = vunpack.c.h.b16 %v503
        %v684 = vunpack.c.l.b16 %v504
        %v685 = vunpack.c.h.b16 %v504
        %v686 = vunpack.c.l.b16 %v505
        %v687 = vunpack.c.h.b16 %v505
        %v688 = vunpack.c.l.b16 %v506
        %v689 = vunpack.c.h.b16 %v506
        %v690 = vunpack.c.l.b16 %v507
        %v691 = vunpack.c.h.b16 %v507
        %v692 = vunpack.c.l.b16 %v508
        %v693 = vunpack.c.h.b16 %v508
        %v694 = vunpack.c.l.b16 %v509
        %v695 = vunpack.c.h.b16 %v509
        %v696 = vunpack.c.l.b16 %v510
        %v697 = vunpack.c.h.b16 %v510
        %v698 = vunpack.c.l.b16 %v511
        %v699 = vunpack.c.h.b16 %v511
        %v700 = vunpack.c.l.b16 %v512
        %v701 = vunpack.c.h.b16 %v512
        %v702 = vunpack.c.l.b16 %v513
        %v703 = vunpack.c.h.b16 %v513
        %v704 = vunpack.c.l.b16 %v514
        %v705 = vunpack.c.h.b16 %v514
        %v706 = vunpack.c.l.b16 %v515
        %v707 = vunpack.c.h.b16 %v515
        %v708 = vpack.c.b16 %v584, %v580
        %v709 = vpack.c.b16 %v585, %v581
        %v710 = vpack.c.b16 %v586, %v582
        %v711 = vpack.c.b16 %v587, %v583
        %v712 = vpack.c.b16 %v592, %v588
        %v713 = vpack.c.b16 %v593, %v589
        %v714 = vpack.c.b16 %v594, %v590
        %v715 = vpack.c.b16 %v595, %v591
        %v716 = vpack.c.b16 %v600, %v596
        %v717 = vpack.c.b16 %v601, %v597
        %v718 = vpack.c.b16 %v602, %v598
        %v719 = vpack.c.b16 %v603, %v599
        %v720 = vpack.c.b16 %v608, %v604
        %v721 = vpack.c.b16 %v609, %v605
        %v722 = vpack.c.b16 %v610, %v606
        %v723 = vpack.c.b16 %v611, %v607
        %v724 = vpack.c.b16 %v616, %v612
        %v725 = vpack.c.b16 %v617, %v613
        %v726 = vpack.c.b16 %v618, %v614
        %v727 = vpack.c.b16 %v619, %v615
        %v728 = vpack.c.b16 %v624, %v620
        %v729 = vpack.c.b16 %v625, %v621
        %v730 = vpack.c.b16 %v626, %v622
        %v731 = vpack.c.b16 %v627, %v623
        %v732 = vpack.c.b16 %v632, %v628
        %v733 = vpack.c.b16 %v633, %v629
        %v734 = vpack.c.b16 %v634, %v630
        %v735 = vpack.c.b16 %v635, %v631
        %v736 = vpack.c.b16 %v640, %v636
        %v737 = vpack.c.b16 %v641, %v637
        %v738 = vpack.c.b16 %v642, %v638
        %v739 = vpack.c.b16 %v643, %v639
        %v740 = vpack.c.b16 %v648, %v644
        %v741 = vpack.c.b16 %v649, %v645
        %v742 = vpack.c.b16 %v650, %v646
        %v743 = vpack.c.b16 %v651, %v647
        %v744 = vpack.c.b16 %v656, %v652
        %v745 = vpack.c.b16 %v657, %v653
        %v746 = vpack.c.b16 %v658, %v654
        %v747 = vpack.c.b16 %v659, %v655
        %v748 = vpack.c.b16 %v664, %v660
        %v749 = vpack.c.b16 %v665, %v661
        %v750 = vpack.c.b16 %v666, %v662
        %v751 = vpack.c.b16 %v667, %v663
        %v752 = vpack.c.b16 %v672, %v668
        %v753 = vpack.c.b16 %v673, %v669
        %v754 = vpack.c.b16 %v674, %v670
        %v755 = vpack.c.b16 %v675, %v671
        %v756 = vpack.c.b16 %v680, %v676
        %v757 = vpack.c.b16 %v681, %v677
        %v758 = vpack.c.b16 %v682, %v678
        %v759 = vpack.c.b16 %v683, %v679
        %v760 = vpack.c.b16 %v688, %v684
        %v761 = vpack.c.b16 %v689, %v685
        %v762 = vpack.c.b16 %v690, %v686
        %v763 = vpack.c.b16 %v691, %v687
        %v764 = vpack.c.b16 %v696, %v692
        %v765 = vpack.c.b16 %v697, %v693
        %v766 = vpack.c.b16 %v698, %v694
        %v767 = vpack.c.b16 %v699, %v695
        %v768 = vpack.c.b16 %v704, %v700
        %v769 = vpack.c.b16 %v705, %v701
        %v770 = vpack.c.b16 %v706, %v702
        %v771 = vpack.c.b16 %v707, %v703
        %836 = vmatprep.subr.bf16.mxu0 %v737
        %837 = vmatpush1.bf16.msra.mxu0 %v736
        %838 = vmatprep.subr.bf16.mxu0 %v733
        %839 = vmatpush1.bf16.msra.mxu0 %v732
        %840 = vmatprep.subr.bf16.mxu0 %v729
        %841 = vmatpush1.bf16.msra.mxu0 %v728
        %842 = vmatprep.subr.bf16.mxu0 %v725
        %843 = vmatpush1.bf16.msra.mxu0 %v724
        %844 = vmatprep.subr.bf16.mxu0 %v721
        %845 = vmatpush1.bf16.msra.mxu0 %v720
        %846 = vmatprep.subr.bf16.mxu0 %v717
        %847 = vmatpush1.bf16.msra.mxu0 %v716
        %848 = vmatprep.subr.bf16.mxu0 %v713
        %849 = vmatpush1.bf16.msra.mxu0 %v712
        %850 = vmatprep.subr.bf16.mxu0 %v709
        %851 = vmatpush1.bf16.msra.mxu0 %v708
        %852 = vmatprep.subr.bf16.mxu0 %v769
        %853 = vmatpush2.bf16.msra.mxu0 %v768
        %854 = vmatprep.subr.bf16.mxu0 %v765
        %855 = vmatpush2.bf16.msra.mxu0 %v764
        %856 = vmatprep.subr.bf16.mxu0 %v761
        %857 = vmatpush2.bf16.msra.mxu0 %v760
        %858 = vmatprep.subr.bf16.mxu0 %v757
        %859 = vmatpush2.bf16.msra.mxu0 %v756
        %860 = vmatprep.subr.bf16.mxu0 %v753
        %861 = vmatpush2.bf16.msra.mxu0 %v752
        %862 = vmatprep.subr.bf16.mxu0 %v749
        %863 = vmatpush2.bf16.msra.mxu0 %v748
        %864 = vmatprep.subr.bf16.mxu0 %v745
        %865 = vmatpush2.bf16.msra.mxu0 %v744
        %866 = vmatprep.subr.bf16.mxu0 %v741
        %867 = vmatpush2.bf16.msra.mxu0 %v740
        %868 = vmatprep.mubr.bf16.mxu0 %v447
        %869 = vmatmul.mubr.bf16.gmra.mxu0 %v446
        %v870 = vpop.f32.mrf.mxu0
        %v871 = vadd.f32 0.0, %v870
        %v872 = vpop.f32.mrf.mxu0
        %v873 = vadd.f32 0.0, %v872
        %v874 = vpop.f32.mrf.mxu0
        %v875 = vpop.f32.mrf.mxu0
        %876 = vdwg.mxu0
        %877 = vmatprep.subr.bf16.mxu0 %v739
        %878 = vmatpush1.bf16.msra.mxu0 %v738
        %879 = vmatprep.subr.bf16.mxu0 %v735
        %880 = vmatpush1.bf16.msra.mxu0 %v734
        %881 = vmatprep.subr.bf16.mxu0 %v731
        %882 = vmatpush1.bf16.msra.mxu0 %v730
        %883 = vmatprep.subr.bf16.mxu0 %v727
        %884 = vmatpush1.bf16.msra.mxu0 %v726
        %885 = vmatprep.subr.bf16.mxu0 %v723
        %886 = vmatpush1.bf16.msra.mxu0 %v722
        %887 = vmatprep.subr.bf16.mxu0 %v719
        %888 = vmatpush1.bf16.msra.mxu0 %v718
        %889 = vmatprep.subr.bf16.mxu0 %v715
        %890 = vmatpush1.bf16.msra.mxu0 %v714
        %891 = vmatprep.subr.bf16.mxu0 %v711
        %892 = vmatpush1.bf16.msra.mxu0 %v710
        %893 = vmatprep.subr.bf16.mxu0 %v771
        %894 = vmatpush2.bf16.msra.mxu0 %v770
        %895 = vmatprep.subr.bf16.mxu0 %v767
        %896 = vmatpush2.bf16.msra.mxu0 %v766
        %897 = vmatprep.subr.bf16.mxu0 %v763
        %898 = vmatpush2.bf16.msra.mxu0 %v762
        %899 = vmatprep.subr.bf16.mxu0 %v759
        %900 = vmatpush2.bf16.msra.mxu0 %v758
        %901 = vmatprep.subr.bf16.mxu0 %v755
        %902 = vmatpush2.bf16.msra.mxu0 %v754
        %903 = vmatprep.subr.bf16.mxu0 %v751
        %904 = vmatpush2.bf16.msra.mxu0 %v750
        %905 = vmatprep.subr.bf16.mxu0 %v747
        %906 = vmatpush2.bf16.msra.mxu0 %v746
        %907 = vmatprep.subr.bf16.mxu0 %v743
        %908 = vmatpush2.bf16.msra.mxu0 %v742
        %909 = vmatprep.mubr.bf16.mxu0 %v447
        %910 = vmatmul.mubr.bf16.gmra.mxu0 %v446
        %v911 = vpop.f32.mrf.mxu0
        %v912 = vadd.f32 0.0, %v911
        %v913 = vpop.f32.mrf.mxu0
        %v914 = vadd.f32 0.0, %v913
        %v915 = vpop.f32.mrf.mxu0
        %v916 = vpop.f32.mrf.mxu0
        %917 = vdwg.mxu0
        %v918 = vadd.f32 %v448, %v871
        %v919 = vadd.f32 %v449, %v873
        %v920 = vadd.f32 %v450, %v912
        %v921 = vadd.f32 %v451, %v914
        %922 = vst [vmem:[#allocation2] sm:$0xff] %v918
        %923 = vst [vmem:[#allocation2 + $0x8] sm:$0xff] %v919
        %924 = vst [vmem:[#allocation2 + $0x10] sm:$0xff] %v920
        %925 = vst [vmem:[#allocation2 + $0x18] sm:$0xff] %v921
        %p926 = scmp.eq.s32.totalorder %s28, 3
        // Predicated region
        $region85: #{food5k_classifier.1} parent=55 // pred_check
          %p927 = pneg %p926
        $region86: #{food5k_classifier.1} parent=55 // pred_check_branch
          %929 = sbr.rel (%p927) target = $region88
        $region87: #{food5k_classifier.1} parent=55 // pred_region
          %v930 = vld [vmem:[#allocation2] sm:$0xff]
          %v931 = vld [vmem:[#allocation2 + $0x8] sm:$0xff]
          %v932 = vld [vmem:[#allocation2 + $0x10] sm:$0xff]
          %v933 = vld [vmem:[#allocation2 + $0x18] sm:$0xff]
          %v934 = vrot.slane %v930, 4
          %v935 = vadd.f32 %v930, %v934
          %v936 = vrot.slane %v935, 2
          %v937 = vadd.f32 %v935, %v936
          %v938 = vrot.slane %v937, 1
          %v939 = vadd.f32 %v937, %v938
          %v940 = vrot.slane %v931, 4
          %v941 = vadd.f32 %v931, %v940
          %v942 = vrot.slane %v941, 2
          %v943 = vadd.f32 %v941, %v942
          %v944 = vrot.slane %v943, 1
          %v945 = vadd.f32 %v943, %v944
          %v946 = vrot.slane %v932, 4
          %v947 = vadd.f32 %v932, %v946
          %v948 = vrot.slane %v947, 2
          %v949 = vadd.f32 %v947, %v948
          %v950 = vrot.slane %v949, 1
          %v951 = vadd.f32 %v949, %v950
          %v952 = vrot.slane %v933, 4
          %v953 = vadd.f32 %v933, %v952
          %v954 = vrot.slane %v953, 2
          %v955 = vadd.f32 %v953, %v954
          %v956 = vrot.slane %v955, 1
          %v957 = vadd.f32 %v955, %v956
          %v958 = vmul.f32 %v939, 0.125
          %v959 = vmul.f32 %v945, 0.125
          %v960 = vmul.f32 %v951, 0.125
          %v961 = vmul.f32 %v957, 0.125
          %v962 = vmul.f32 %v930, %v930
          %v963 = vmul.f32 %v931, %v931
          %v964 = vmul.f32 %v932, %v932
          %v965 = vmul.f32 %v933, %v933
          %v966 = vrot.slane %v962, 4
          %v967 = vadd.f32 %v962, %v966
          %v968 = vrot.slane %v967, 2
          %v969 = vadd.f32 %v967, %v968
          %v970 = vrot.slane %v969, 1
          %v971 = vadd.f32 %v969, %v970
          %v972 = vrot.slane %v963, 4
          %v973 = vadd.f32 %v963, %v972
          %v974 = vrot.slane %v973, 2
          %v975 = vadd.f32 %v973, %v974
          %v976 = vrot.slane %v975, 1
          %v977 = vadd.f32 %v975, %v976
          %v978 = vrot.slane %v964, 4
          %v979 = vadd.f32 %v964, %v978
          %v980 = vrot.slane %v979, 2
          %v981 = vadd.f32 %v979, %v980
          %v982 = vrot.slane %v981, 1
          %v983 = vadd.f32 %v981, %v982
          %v984 = vrot.slane %v965, 4
          %v985 = vadd.f32 %v965, %v984
          %v986 = vrot.slane %v985, 2
          %v987 = vadd.f32 %v985, %v986
          %v988 = vrot.slane %v987, 1
          %v989 = vadd.f32 %v987, %v988
          %v990 = vmul.f32 %v971, 0.125
          %v991 = vmul.f32 %v977, 0.125
          %v992 = vmul.f32 %v983, 0.125
          %v993 = vmul.f32 %v989, 0.125
          %v994 = vmul.f32 %v958, %v958
          %v995 = vmul.f32 %v959, %v959
          %v996 = vmul.f32 %v960, %v960
          %v997 = vmul.f32 %v961, %v961
          %v998 = vsub.f32 %v990, %v994
          %v999 = vsub.f32 %v991, %v995
          %v1000 = vsub.f32 %v992, %v996
          %v1001 = vsub.f32 %v993, %v997
          %v1002 = vmax.f32 %v998, 0.0
          %v1003 = vmax.f32 %v999, 0.0
          %v1004 = vmax.f32 %v1000, 0.0
          %v1005 = vmax.f32 %v1001, 0.0
          %v1006 = vadd.f32 %v1002, 1e-05
          %v1007 = vadd.f32 %v1003, 1e-05
          %v1008 = vadd.f32 %v1004, 1e-05
          %v1009 = vadd.f32 %v1005, 1e-05
          %v1010 = vrsqrt.pop %v1006
          %v1011 = vrsqrt.pop %v1007
          %v1012 = vrsqrt.pop %v1008
          %v1013 = vrsqrt.pop %v1009
          %v1014 = vld [vmem:[%s2] sm:$0xf]
          %v1016 = vlaneseq
          %v1017 = vshrl.u32 %v1016, 7
          %v1018 = vsub.s32 0, %v1017
          %v1019 = vrot.slane %v1014, %v1018
          %v1020 = vlaneseq
          %v1021 = vshrl.u32 %v1020, 7
          %v1022 = vsub.s32 1, %v1021
          %v1023 = vrot.slane %v1014, %v1022
          %v1024 = vlaneseq
          %v1025 = vshrl.u32 %v1024, 7
          %v1026 = vsub.s32 2, %v1025
          %v1027 = vrot.slane %v1014, %v1026
          %v1028 = vlaneseq
          %v1029 = vshrl.u32 %v1028, 7
          %v1030 = vsub.s32 3, %v1029
          %v1031 = vrot.slane %v1014, %v1030
          %v1036 = vmul.f32 %v1010, %v1019
          %v1037 = vmul.f32 %v1011, %v1023
          %v1038 = vmul.f32 %v1012, %v1027
          %v1039 = vmul.f32 %v1013, %v1031
          %v1040 = vld [vmem:[#allocation7] sm:$0xf]
          %v1041 = vmul.f32 %v958, %v1036
          %v1042 = vmul.f32 %v959, %v1037
          %v1043 = vmul.f32 %v960, %v1038
          %v1044 = vmul.f32 %v961, %v1039
          %v1049 = vcombine.low %v1041, %v1042
          %v1050 = vcombine.low %v1043, %v1044
          %v1052 = vunpack.c.l.s4 1966171168
          %v1053 = vunpack.c.0.s8 %v1052
          %v1054 = vlaneseq
          %v1055 = vshrl.u32 %v1054, 7
          %v1056 = vsub.s32 %v1053, %v1055
          %v1057 = vrot.slane %v1049, %v1056
          %v1059 = vunpack.c.l.s4 1966171168
          %v1060 = vunpack.c.0.s8 %v1059
          %v1061 = vlaneseq
          %v1062 = vshrl.u32 %v1061, 7
          %v1063 = vsub.s32 %v1060, %v1062
          %v1064 = vrot.slane %v1050, %v1063
          %v1065 = vcombine.low %v1057, %v1064
          %v1067 = vunpack.c.l.s4 1966171168
          %v1068 = vunpack.c.0.s8 %v1067
          %v1069 = vlaneseq
          %v1070 = vshrl.u32 %v1069, 7
          %v1071 = vsub.s32 %v1068, %v1070
          %v1072 = vrot.slane %v1065, %v1071
          %v1074 = vsub.f32 %v1040, %v1072
          %v1075 = vlaneseq
          %v1076 = vshrl.u32 %v1075, 7
          %v1077 = vsub.s32 0, %v1076
          %v1078 = vrot.slane %v1036, %v1077
          %v1079 = vlaneseq
          %v1080 = vshrl.u32 %v1079, 7
          %v1081 = vsub.s32 0, %v1080
          %v1082 = vrot.slane %v1037, %v1081
          %v1083 = vlaneseq
          %v1084 = vshrl.u32 %v1083, 7
          %v1085 = vsub.s32 0, %v1084
          %v1086 = vrot.slane %v1038, %v1085
          %v1087 = vlaneseq
          %v1088 = vshrl.u32 %v1087, 7
          %v1089 = vsub.s32 0, %v1088
          %v1090 = vrot.slane %v1039, %v1089
          %v1091 = vmul.f32 %v930, %v1078
          %v1092 = vmul.f32 %v931, %v1082
          %v1093 = vmul.f32 %v932, %v1086
          %v1094 = vmul.f32 %v933, %v1090
          %v1096 = vlaneseq
          %v1097 = vshrl.u32 %v1096, 7
          %v1098 = vsub.s32 0, %v1097
          %v1099 = vrot.slane %v1074, %v1098
          %v1100 = vlaneseq
          %v1101 = vshrl.u32 %v1100, 7
          %v1102 = vsub.s32 1, %v1101
          %v1103 = vrot.slane %v1074, %v1102
          %v1104 = vlaneseq
          %v1105 = vshrl.u32 %v1104, 7
          %v1106 = vsub.s32 2, %v1105
          %v1107 = vrot.slane %v1074, %v1106
          %v1108 = vlaneseq
          %v1109 = vshrl.u32 %v1108, 7
          %v1110 = vsub.s32 3, %v1109
          %v1111 = vrot.slane %v1074, %v1110
          %v1116 = vadd.f32 %v1091, %v1099
          %v1117 = vadd.f32 %v1092, %v1103
          %v1118 = vadd.f32 %v1093, %v1107
          %v1119 = vadd.f32 %v1094, %v1111
          %v1120 = vmax.f32 %v1116, 0.0
          %v1121 = vmax.f32 %v1117, 0.0
          %v1122 = vmax.f32 %v1118, 0.0
          %v1123 = vmax.f32 %v1119, 0.0
          %v1124 = vpack.c.bf16 %v1120, %v1120
          %v1125 = vpack.c.bf16 %v1121, %v1121
          %v1126 = vpack.c.bf16 %v1122, %v1122
          %v1127 = vpack.c.bf16 %v1123, %v1123
          %v1128 = vld [vmem:[#allocation8] sm:$0xff]
          %v1129 = vld [vmem:[#allocation8 + $0x8] sm:$0xff]
          %v1130 = vld [vmem:[#allocation8 + $0x10] sm:$0xff]
          %v1131 = vld [vmem:[#allocation8 + $0x18] sm:$0xff]
          %v1132 = vld [vmem:[#allocation8 + $0x20] sm:$0xff]
          %v1133 = vld [vmem:[#allocation8 + $0x28] sm:$0xff]
          %v1134 = vld [vmem:[#allocation8 + $0x30] sm:$0xff]
          %v1135 = vld [vmem:[#allocation8 + $0x38] sm:$0xff]
          %v1136 = vld [vmem:[#allocation8 + $0x40] sm:$0xff]
          %v1137 = vld [vmem:[#allocation8 + $0x48] sm:$0xff]
          %v1138 = vld [vmem:[#allocation8 + $0x50] sm:$0xff]
          %v1139 = vld [vmem:[#allocation8 + $0x58] sm:$0xff]
          %v1140 = vld [vmem:[#allocation8 + $0x60] sm:$0xff]
          %v1141 = vld [vmem:[#allocation8 + $0x68] sm:$0xff]
          %v1142 = vld [vmem:[#allocation8 + $0x70] sm:$0xff]
          %v1143 = vld [vmem:[#allocation8 + $0x78] sm:$0xff]
          %v1144 = vld [vmem:[#allocation8 + $0x80] sm:$0xff]
          %v1145 = vld [vmem:[#allocation8 + $0x88] sm:$0xff]
          %v1146 = vld [vmem:[#allocation8 + $0x90] sm:$0xff]
          %v1147 = vld [vmem:[#allocation8 + $0x98] sm:$0xff]
          %v1148 = vld [vmem:[#allocation8 + $0xa0] sm:$0xff]
          %v1149 = vld [vmem:[#allocation8 + $0xa8] sm:$0xff]
          %v1150 = vld [vmem:[#allocation8 + $0xb0] sm:$0xff]
          %v1151 = vld [vmem:[#allocation8 + $0xb8] sm:$0xff]
          %v1152 = vld [vmem:[#allocation8 + $0xc0] sm:$0xff]
          %v1153 = vld [vmem:[#allocation8 + $0xc8] sm:$0xff]
          %v1154 = vld [vmem:[#allocation8 + $0xd0] sm:$0xff]
          %v1155 = vld [vmem:[#allocation8 + $0xd8] sm:$0xff]
          %v1156 = vld [vmem:[#allocation8 + $0xe0] sm:$0xff]
          %v1157 = vld [vmem:[#allocation8 + $0xe8] sm:$0xff]
          %v1158 = vld [vmem:[#allocation8 + $0xf0] sm:$0xff]
          %v1159 = vld [vmem:[#allocation8 + $0xf8] sm:$0xff]
          %v1160 = vld [vmem:[#allocation8 + $0x100] sm:$0xff]
          %v1161 = vld [vmem:[#allocation8 + $0x108] sm:$0xff]
          %v1162 = vld [vmem:[#allocation8 + $0x110] sm:$0xff]
          %v1163 = vld [vmem:[#allocation8 + $0x118] sm:$0xff]
          %v1164 = vld [vmem:[#allocation8 + $0x120] sm:$0xff]
          %v1165 = vld [vmem:[#allocation8 + $0x128] sm:$0xff]
          %v1166 = vld [vmem:[#allocation8 + $0x130] sm:$0xff]
          %v1167 = vld [vmem:[#allocation8 + $0x138] sm:$0xff]
          %v1168 = vld [vmem:[#allocation8 + $0x140] sm:$0xff]
          %v1169 = vld [vmem:[#allocation8 + $0x148] sm:$0xff]
          %v1170 = vld [vmem:[#allocation8 + $0x150] sm:$0xff]
          %v1171 = vld [vmem:[#allocation8 + $0x158] sm:$0xff]
          %v1172 = vld [vmem:[#allocation8 + $0x160] sm:$0xff]
          %v1173 = vld [vmem:[#allocation8 + $0x168] sm:$0xff]
          %v1174 = vld [vmem:[#allocation8 + $0x170] sm:$0xff]
          %v1175 = vld [vmem:[#allocation8 + $0x178] sm:$0xff]
          %v1176 = vld [vmem:[#allocation8 + $0x180] sm:$0xff]
          %v1177 = vld [vmem:[#allocation8 + $0x188] sm:$0xff]
          %v1178 = vld [vmem:[#allocation8 + $0x190] sm:$0xff]
          %v1179 = vld [vmem:[#allocation8 + $0x198] sm:$0xff]
          %v1180 = vld [vmem:[#allocation8 + $0x1a0] sm:$0xff]
          %v1181 = vld [vmem:[#allocation8 + $0x1a8] sm:$0xff]
          %v1182 = vld [vmem:[#allocation8 + $0x1b0] sm:$0xff]
          %v1183 = vld [vmem:[#allocation8 + $0x1b8] sm:$0xff]
          %v1184 = vld [vmem:[#allocation8 + $0x1c0] sm:$0xff]
          %v1185 = vld [vmem:[#allocation8 + $0x1c8] sm:$0xff]
          %v1186 = vld [vmem:[#allocation8 + $0x1d0] sm:$0xff]
          %v1187 = vld [vmem:[#allocation8 + $0x1d8] sm:$0xff]
          %v1188 = vld [vmem:[#allocation8 + $0x1e0] sm:$0xff]
          %v1189 = vld [vmem:[#allocation8 + $0x1e8] sm:$0xff]
          %v1190 = vld [vmem:[#allocation8 + $0x1f0] sm:$0xff]
          %v1191 = vld [vmem:[#allocation8 + $0x1f8] sm:$0xff]
          %v1256 = vunpack.c.l.b16 %v1128
          %v1257 = vunpack.c.h.b16 %v1128
          %v1258 = vunpack.c.l.b16 %v1129
          %v1259 = vunpack.c.h.b16 %v1129
          %v1260 = vunpack.c.l.b16 %v1130
          %v1261 = vunpack.c.h.b16 %v1130
          %v1262 = vunpack.c.l.b16 %v1131
          %v1263 = vunpack.c.h.b16 %v1131
          %v1264 = vunpack.c.l.b16 %v1132
          %v1265 = vunpack.c.h.b16 %v1132
          %v1266 = vunpack.c.l.b16 %v1133
          %v1267 = vunpack.c.h.b16 %v1133
          %v1268 = vunpack.c.l.b16 %v1134
          %v1269 = vunpack.c.h.b16 %v1134
          %v1270 = vunpack.c.l.b16 %v1135
          %v1271 = vunpack.c.h.b16 %v1135
          %v1272 = vunpack.c.l.b16 %v1136
          %v1273 = vunpack.c.h.b16 %v1136
          %v1274 = vunpack.c.l.b16 %v1137
          %v1275 = vunpack.c.h.b16 %v1137
          %v1276 = vunpack.c.l.b16 %v1138
          %v1277 = vunpack.c.h.b16 %v1138
          %v1278 = vunpack.c.l.b16 %v1139
          %v1279 = vunpack.c.h.b16 %v1139
          %v1280 = vunpack.c.l.b16 %v1140
          %v1281 = vunpack.c.h.b16 %v1140
          %v1282 = vunpack.c.l.b16 %v1141
          %v1283 = vunpack.c.h.b16 %v1141
          %v1284 = vunpack.c.l.b16 %v1142
          %v1285 = vunpack.c.h.b16 %v1142
          %v1286 = vunpack.c.l.b16 %v1143
          %v1287 = vunpack.c.h.b16 %v1143
          %v1288 = vunpack.c.l.b16 %v1144
          %v1289 = vunpack.c.h.b16 %v1144
          %v1290 = vunpack.c.l.b16 %v1145
          %v1291 = vunpack.c.h.b16 %v1145
          %v1292 = vunpack.c.l.b16 %v1146
          %v1293 = vunpack.c.h.b16 %v1146
          %v1294 = vunpack.c.l.b16 %v1147
          %v1295 = vunpack.c.h.b16 %v1147
          %v1296 = vunpack.c.l.b16 %v1148
          %v1297 = vunpack.c.h.b16 %v1148
          %v1298 = vunpack.c.l.b16 %v1149
          %v1299 = vunpack.c.h.b16 %v1149
          %v1300 = vunpack.c.l.b16 %v1150
          %v1301 = vunpack.c.h.b16 %v1150
          %v1302 = vunpack.c.l.b16 %v1151
          %v1303 = vunpack.c.h.b16 %v1151
          %v1304 = vunpack.c.l.b16 %v1152
          %v1305 = vunpack.c.h.b16 %v1152
          %v1306 = vunpack.c.l.b16 %v1153
          %v1307 = vunpack.c.h.b16 %v1153
          %v1308 = vunpack.c.l.b16 %v1154
          %v1309 = vunpack.c.h.b16 %v1154
          %v1310 = vunpack.c.l.b16 %v1155
          %v1311 = vunpack.c.h.b16 %v1155
          %v1312 = vunpack.c.l.b16 %v1156
          %v1313 = vunpack.c.h.b16 %v1156
          %v1314 = vunpack.c.l.b16 %v1157
          %v1315 = vunpack.c.h.b16 %v1157
          %v1316 = vunpack.c.l.b16 %v1158
          %v1317 = vunpack.c.h.b16 %v1158
          %v1318 = vunpack.c.l.b16 %v1159
          %v1319 = vunpack.c.h.b16 %v1159
          %v1320 = vunpack.c.l.b16 %v1160
          %v1321 = vunpack.c.h.b16 %v1160
          %v1322 = vunpack.c.l.b16 %v1161
          %v1323 = vunpack.c.h.b16 %v1161
          %v1324 = vunpack.c.l.b16 %v1162
          %v1325 = vunpack.c.h.b16 %v1162
          %v1326 = vunpack.c.l.b16 %v1163
          %v1327 = vunpack.c.h.b16 %v1163
          %v1328 = vunpack.c.l.b16 %v1164
          %v1329 = vunpack.c.h.b16 %v1164
          %v1330 = vunpack.c.l.b16 %v1165
          %v1331 = vunpack.c.h.b16 %v1165
          %v1332 = vunpack.c.l.b16 %v1166
          %v1333 = vunpack.c.h.b16 %v1166
          %v1334 = vunpack.c.l.b16 %v1167
          %v1335 = vunpack.c.h.b16 %v1167
          %v1336 = vunpack.c.l.b16 %v1168
          %v1337 = vunpack.c.h.b16 %v1168
          %v1338 = vunpack.c.l.b16 %v1169
          %v1339 = vunpack.c.h.b16 %v1169
          %v1340 = vunpack.c.l.b16 %v1170
          %v1341 = vunpack.c.h.b16 %v1170
          %v1342 = vunpack.c.l.b16 %v1171
          %v1343 = vunpack.c.h.b16 %v1171
          %v1344 = vunpack.c.l.b16 %v1172
          %v1345 = vunpack.c.h.b16 %v1172
          %v1346 = vunpack.c.l.b16 %v1173
          %v1347 = vunpack.c.h.b16 %v1173
          %v1348 = vunpack.c.l.b16 %v1174
          %v1349 = vunpack.c.h.b16 %v1174
          %v1350 = vunpack.c.l.b16 %v1175
          %v1351 = vunpack.c.h.b16 %v1175
          %v1352 = vunpack.c.l.b16 %v1176
          %v1353 = vunpack.c.h.b16 %v1176
          %v1354 = vunpack.c.l.b16 %v1177
          %v1355 = vunpack.c.h.b16 %v1177
          %v1356 = vunpack.c.l.b16 %v1178
          %v1357 = vunpack.c.h.b16 %v1178
          %v1358 = vunpack.c.l.b16 %v1179
          %v1359 = vunpack.c.h.b16 %v1179
          %v1360 = vunpack.c.l.b16 %v1180
          %v1361 = vunpack.c.h.b16 %v1180
          %v1362 = vunpack.c.l.b16 %v1181
          %v1363 = vunpack.c.h.b16 %v1181
          %v1364 = vunpack.c.l.b16 %v1182
          %v1365 = vunpack.c.h.b16 %v1182
          %v1366 = vunpack.c.l.b16 %v1183
          %v1367 = vunpack.c.h.b16 %v1183
          %v1368 = vunpack.c.l.b16 %v1184
          %v1369 = vunpack.c.h.b16 %v1184
          %v1370 = vunpack.c.l.b16 %v1185
          %v1371 = vunpack.c.h.b16 %v1185
          %v1372 = vunpack.c.l.b16 %v1186
          %v1373 = vunpack.c.h.b16 %v1186
          %v1374 = vunpack.c.l.b16 %v1187
          %v1375 = vunpack.c.h.b16 %v1187
          %v1376 = vunpack.c.l.b16 %v1188
          %v1377 = vunpack.c.h.b16 %v1188
          %v1378 = vunpack.c.l.b16 %v1189
          %v1379 = vunpack.c.h.b16 %v1189
          %v1380 = vunpack.c.l.b16 %v1190
          %v1381 = vunpack.c.h.b16 %v1190
          %v1382 = vunpack.c.l.b16 %v1191
          %v1383 = vunpack.c.h.b16 %v1191
          %v1384 = vpack.c.b16 %v1258, %v1256
          %v1385 = vpack.c.b16 %v1259, %v1257
          %v1386 = vpack.c.b16 %v1262, %v1260
          %v1387 = vpack.c.b16 %v1263, %v1261
          %v1388 = vpack.c.b16 %v1266, %v1264
          %v1389 = vpack.c.b16 %v1267, %v1265
          %v1390 = vpack.c.b16 %v1270, %v1268
          %v1391 = vpack.c.b16 %v1271, %v1269
          %v1392 = vpack.c.b16 %v1274, %v1272
          %v1393 = vpack.c.b16 %v1275, %v1273
          %v1394 = vpack.c.b16 %v1278, %v1276
          %v1395 = vpack.c.b16 %v1279, %v1277
          %v1396 = vpack.c.b16 %v1282, %v1280
          %v1397 = vpack.c.b16 %v1283, %v1281
          %v1398 = vpack.c.b16 %v1286, %v1284
          %v1399 = vpack.c.b16 %v1287, %v1285
          %v1400 = vpack.c.b16 %v1290, %v1288
          %v1401 = vpack.c.b16 %v1291, %v1289
          %v1402 = vpack.c.b16 %v1294, %v1292
          %v1403 = vpack.c.b16 %v1295, %v1293
          %v1404 = vpack.c.b16 %v1298, %v1296
          %v1405 = vpack.c.b16 %v1299, %v1297
          %v1406 = vpack.c.b16 %v1302, %v1300
          %v1407 = vpack.c.b16 %v1303, %v1301
          %v1408 = vpack.c.b16 %v1306, %v1304
          %v1409 = vpack.c.b16 %v1307, %v1305
          %v1410 = vpack.c.b16 %v1310, %v1308
          %v1411 = vpack.c.b16 %v1311, %v1309
          %v1412 = vpack.c.b16 %v1314, %v1312
          %v1413 = vpack.c.b16 %v1315, %v1313
          %v1414 = vpack.c.b16 %v1318, %v1316
          %v1415 = vpack.c.b16 %v1319, %v1317
          %v1416 = vpack.c.b16 %v1322, %v1320
          %v1417 = vpack.c.b16 %v1323, %v1321
          %v1418 = vpack.c.b16 %v1326, %v1324
          %v1419 = vpack.c.b16 %v1327, %v1325
          %v1420 = vpack.c.b16 %v1330, %v1328
          %v1421 = vpack.c.b16 %v1331, %v1329
          %v1422 = vpack.c.b16 %v1334, %v1332
          %v1423 = vpack.c.b16 %v1335, %v1333
          %v1424 = vpack.c.b16 %v1338, %v1336
          %v1425 = vpack.c.b16 %v1339, %v1337
          %v1426 = vpack.c.b16 %v1342, %v1340
          %v1427 = vpack.c.b16 %v1343, %v1341
          %v1428 = vpack.c.b16 %v1346, %v1344
          %v1429 = vpack.c.b16 %v1347, %v1345
          %v1430 = vpack.c.b16 %v1350, %v1348
          %v1431 = vpack.c.b16 %v1351, %v1349
          %v1432 = vpack.c.b16 %v1354, %v1352
          %v1433 = vpack.c.b16 %v1355, %v1353
          %v1434 = vpack.c.b16 %v1358, %v1356
          %v1435 = vpack.c.b16 %v1359, %v1357
          %v1436 = vpack.c.b16 %v1362, %v1360
          %v1437 = vpack.c.b16 %v1363, %v1361
          %v1438 = vpack.c.b16 %v1366, %v1364
          %v1439 = vpack.c.b16 %v1367, %v1365
          %v1440 = vpack.c.b16 %v1370, %v1368
          %v1441 = vpack.c.b16 %v1371, %v1369
          %v1442 = vpack.c.b16 %v1374, %v1372
          %v1443 = vpack.c.b16 %v1375, %v1373
          %v1444 = vpack.c.b16 %v1378, %v1376
          %v1445 = vpack.c.b16 %v1379, %v1377
          %v1446 = vpack.c.b16 %v1382, %v1380
          %v1447 = vpack.c.b16 %v1383, %v1381
          %1512 = vmatprep.subr.bf16.mxu0 %v1399
          %1513 = vmatpush1.bf16.msra.mxu0 %v1398
          %1514 = vmatprep.subr.bf16.mxu0 %v1397
          %1515 = vmatpush1.bf16.msra.mxu0 %v1396
          %1516 = vmatprep.subr.bf16.mxu0 %v1395
          %1517 = vmatpush1.bf16.msra.mxu0 %v1394
          %1518 = vmatprep.subr.bf16.mxu0 %v1393
          %1519 = vmatpush1.bf16.msra.mxu0 %v1392
          %1520 = vmatprep.subr.bf16.mxu0 %v1391
          %1521 = vmatpush1.bf16.msra.mxu0 %v1390
          %1522 = vmatprep.subr.bf16.mxu0 %v1389
          %1523 = vmatpush1.bf16.msra.mxu0 %v1388
          %1524 = vmatprep.subr.bf16.mxu0 %v1387
          %1525 = vmatpush1.bf16.msra.mxu0 %v1386
          %1526 = vmatprep.subr.bf16.mxu0 %v1385
          %1527 = vmatpush1.bf16.msra.mxu0 %v1384
          %1528 = vmatprep.subr.bf16.mxu0 %v1415
          %1529 = vmatpush2.bf16.msra.mxu0 %v1414
          %1530 = vmatprep.subr.bf16.mxu0 %v1413
          %1531 = vmatpush2.bf16.msra.mxu0 %v1412
          %1532 = vmatprep.subr.bf16.mxu0 %v1411
          %1533 = vmatpush2.bf16.msra.mxu0 %v1410
          %1534 = vmatprep.subr.bf16.mxu0 %v1409
          %1535 = vmatpush2.bf16.msra.mxu0 %v1408
          %1536 = vmatprep.subr.bf16.mxu0 %v1407
          %1537 = vmatpush2.bf16.msra.mxu0 %v1406
          %1538 = vmatprep.subr.bf16.mxu0 %v1405
          %1539 = vmatpush2.bf16.msra.mxu0 %v1404
          %1540 = vmatprep.subr.bf16.mxu0 %v1403
          %1541 = vmatpush2.bf16.msra.mxu0 %v1402
          %1542 = vmatprep.subr.bf16.mxu0 %v1401
          %1543 = vmatpush2.bf16.msra.mxu0 %v1400
          %1544 = vmatprep.mubr.bf16.mxu0 %v1125
          %1545 = vmatmul.mubr.bf16.gmra.mxu0 %v1124
          %v1546 = vpop.f32.mrf.mxu0
          %v1547 = vadd.f32 0.0, %v1546
          %v1548 = vpop.f32.mrf.mxu0
          %v1549 = vadd.f32 0.0, %v1548
          %v1550 = vpop.f32.mrf.mxu0
          %v1551 = vpop.f32.mrf.mxu0
          %1552 = vdwg.mxu0
          %1553 = vmatprep.subr.bf16.mxu0 %v1431
          %1554 = vmatpush1.bf16.msra.mxu0 %v1430
          %1555 = vmatprep.subr.bf16.mxu0 %v1429
          %1556 = vmatpush1.bf16.msra.mxu0 %v1428
          %1557 = vmatprep.subr.bf16.mxu0 %v1427
          %1558 = vmatpush1.bf16.msra.mxu0 %v1426
          %1559 = vmatprep.subr.bf16.mxu0 %v1425
          %1560 = vmatpush1.bf16.msra.mxu0 %v1424
          %1561 = vmatprep.subr.bf16.mxu0 %v1423
          %1562 = vmatpush1.bf16.msra.mxu0 %v1422
          %1563 = vmatprep.subr.bf16.mxu0 %v1421
          %1564 = vmatpush1.bf16.msra.mxu0 %v1420
          %1565 = vmatprep.subr.bf16.mxu0 %v1419
          %1566 = vmatpush1.bf16.msra.mxu0 %v1418
          %1567 = vmatprep.subr.bf16.mxu0 %v1417
          %1568 = vmatpush1.bf16.msra.mxu0 %v1416
          %1569 = vmatprep.subr.bf16.mxu0 %v1447
          %1570 = vmatpush2.bf16.msra.mxu0 %v1446
          %1571 = vmatprep.subr.bf16.mxu0 %v1445
          %1572 = vmatpush2.bf16.msra.mxu0 %v1444
          %1573 = vmatprep.subr.bf16.mxu0 %v1443
          %1574 = vmatpush2.bf16.msra.mxu0 %v1442
          %1575 = vmatprep.subr.bf16.mxu0 %v1441
          %1576 = vmatpush2.bf16.msra.mxu0 %v1440
          %1577 = vmatprep.subr.bf16.mxu0 %v1439
          %1578 = vmatpush2.bf16.msra.mxu0 %v1438
          %1579 = vmatprep.subr.bf16.mxu0 %v1437
          %1580 = vmatpush2.bf16.msra.mxu0 %v1436
          %1581 = vmatprep.subr.bf16.mxu0 %v1435
          %1582 = vmatpush2.bf16.msra.mxu0 %v1434
          %1583 = vmatprep.subr.bf16.mxu0 %v1433
          %1584 = vmatpush2.bf16.msra.mxu0 %v1432
          %1585 = vmatprep.mubr.bf16.mxu0 %v1127
          %1586 = vmatmul.mubr.bf16.gmra.mxu0 %v1126
          %v1587 = vpop.f32.mrf.mxu0
          %v1588 = vadd.f32 %v1547, %v1587
          %v1589 = vpop.f32.mrf.mxu0
          %v1590 = vadd.f32 %v1549, %v1589
          %v1591 = vpop.f32.mrf.mxu0
          %v1592 = vpop.f32.mrf.mxu0
          %1593 = vdwg.mxu0
          %v1594 = vrot.slane %v1588, 4
          %v1595 = vadd.f32 %v1588, %v1594
          %v1596 = vrot.slane %v1595, 2
          %v1597 = vadd.f32 %v1595, %v1596
          %v1598 = vrot.slane %v1597, 1
          %v1599 = vadd.f32 %v1597, %v1598
          %v1600 = vrot.slane %v1590, 4
          %v1601 = vadd.f32 %v1590, %v1600
          %v1602 = vrot.slane %v1601, 2
          %v1603 = vadd.f32 %v1601, %v1602
          %v1604 = vrot.slane %v1603, 1
          %v1605 = vadd.f32 %v1603, %v1604
          %v1606 = vmul.f32 %v1599, 0.125
          %v1607 = vmul.f32 %v1605, 0.125
          %v1608 = vmul.f32 %v1588, %v1588
          %v1609 = vmul.f32 %v1590, %v1590
          %v1610 = vrot.slane %v1608, 4
          %v1611 = vadd.f32 %v1608, %v1610
          %v1612 = vrot.slane %v1611, 2
          %v1613 = vadd.f32 %v1611, %v1612
          %v1614 = vrot.slane %v1613, 1
          %v1615 = vadd.f32 %v1613, %v1614
          %v1616 = vrot.slane %v1609, 4
          %v1617 = vadd.f32 %v1609, %v1616
          %v1618 = vrot.slane %v1617, 2
          %v1619 = vadd.f32 %v1617, %v1618
          %v1620 = vrot.slane %v1619, 1
          %v1621 = vadd.f32 %v1619, %v1620
          %v1622 = vmul.f32 %v1615, 0.125
          %v1623 = vmul.f32 %v1621, 0.125
          %v1624 = vmul.f32 %v1606, %v1606
          %v1625 = vmul.f32 %v1607, %v1607
          %v1626 = vsub.f32 %v1622, %v1624
          %v1627 = vsub.f32 %v1623, %v1625
          %v1628 = vmax.f32 %v1626, 0.0
          %v1629 = vmax.f32 %v1627, 0.0
          %v1630 = vadd.f32 %v1628, 1e-05
          %v1631 = vadd.f32 %v1629, 1e-05
          %v1632 = vrsqrt.pop %v1630
          %v1633 = vrsqrt.pop %v1631
          %v1634 = vld [vmem:[%s5] sm:$0x3]
          %v1636 = vlaneseq
          %v1637 = vshrl.u32 %v1636, 7
          %v1638 = vsub.s32 0, %v1637
          %v1639 = vrot.slane %v1634, %v1638
          %v1640 = vlaneseq
          %v1641 = vshrl.u32 %v1640, 7
          %v1642 = vsub.s32 1, %v1641
          %v1643 = vrot.slane %v1634, %v1642
          %v1646 = vmul.f32 %v1632, %v1639
          %v1647 = vmul.f32 %v1633, %v1643
          %v1648 = vld [vmem:[#allocation10] sm:$0x3]
          %v1649 = vmul.f32 %v1606, %v1646
          %v1650 = vmul.f32 %v1607, %v1647
          %v1653 = vcombine.low %v1649, %v1650
          %v1655 = vunpack.c.l.s4 1966171168
          %v1656 = vunpack.c.0.s8 %v1655
          %v1657 = vlaneseq
          %v1658 = vshrl.u32 %v1657, 7
          %v1659 = vsub.s32 %v1656, %v1658
          %v1660 = vrot.slane %v1653, %v1659
          %v1662 = vunpack.c.l.s4 1966171168
          %v1663 = vunpack.c.0.s8 %v1662
          %v1664 = vlaneseq
          %v1665 = vshrl.u32 %v1664, 7
          %v1666 = vsub.s32 %v1663, %v1665
          %v1667 = vrot.slane %v1660, %v1666
          %v1669 = vsub.f32 %v1648, %v1667
          %v1670 = vlaneseq
          %v1671 = vshrl.u32 %v1670, 7
          %v1672 = vsub.s32 0, %v1671
          %v1673 = vrot.slane %v1646, %v1672
          %v1674 = vlaneseq
          %v1675 = vshrl.u32 %v1674, 7
          %v1676 = vsub.s32 0, %v1675
          %v1677 = vrot.slane %v1647, %v1676
          %v1678 = vmul.f32 %v1588, %v1673
          %v1679 = vmul.f32 %v1590, %v1677
          %v1681 = vlaneseq
          %v1682 = vshrl.u32 %v1681, 7
          %v1683 = vsub.s32 0, %v1682
          %v1684 = vrot.slane %v1669, %v1683
          %v1685 = vlaneseq
          %v1686 = vshrl.u32 %v1685, 7
          %v1687 = vsub.s32 1, %v1686
          %v1688 = vrot.slane %v1669, %v1687
          %v1691 = vadd.f32 %v1678, %v1684
          %v1692 = vadd.f32 %v1679, %v1688
          %v1693 = vmax.f32 %v1691, 0.0
          %v1694 = vmax.f32 %v1692, 0.0
          %v1695 = vpack.c.bf16 %v1693, %v1693
          %v1696 = vpack.c.bf16 %v1694, %v1694
          %v1697 = vld [vmem:[#allocation11] sm:$0xf]
          %v1698 = vld [vmem:[#allocation11 + $0x4] sm:$0xf]
          %v1699 = vld [vmem:[#allocation11 + $0x8] sm:$0xf]
          %v1700 = vld [vmem:[#allocation11 + $0xc] sm:$0xf]
          %v1701 = vld [vmem:[#allocation11 + $0x10] sm:$0xf]
          %v1702 = vld [vmem:[#allocation11 + $0x14] sm:$0xf]
          %v1703 = vld [vmem:[#allocation11 + $0x18] sm:$0xf]
          %v1704 = vld [vmem:[#allocation11 + $0x1c] sm:$0xf]
          %v1705 = vld [vmem:[#allocation11 + $0x20] sm:$0xf]
          %v1706 = vld [vmem:[#allocation11 + $0x24] sm:$0xf]
          %v1707 = vld [vmem:[#allocation11 + $0x28] sm:$0xf]
          %v1708 = vld [vmem:[#allocation11 + $0x2c] sm:$0xf]
          %v1709 = vld [vmem:[#allocation11 + $0x30] sm:$0xf]
          %v1710 = vld [vmem:[#allocation11 + $0x34] sm:$0xf]
          %v1711 = vld [vmem:[#allocation11 + $0x38] sm:$0xf]
          %v1712 = vld [vmem:[#allocation11 + $0x3c] sm:$0xf]
          %v1713 = vld [vmem:[#allocation11 + $0x40] sm:$0xf]
          %v1714 = vld [vmem:[#allocation11 + $0x44] sm:$0xf]
          %v1715 = vld [vmem:[#allocation11 + $0x48] sm:$0xf]
          %v1716 = vld [vmem:[#allocation11 + $0x4c] sm:$0xf]
          %v1717 = vld [vmem:[#allocation11 + $0x50] sm:$0xf]
          %v1718 = vld [vmem:[#allocation11 + $0x54] sm:$0xf]
          %v1719 = vld [vmem:[#allocation11 + $0x58] sm:$0xf]
          %v1720 = vld [vmem:[#allocation11 + $0x5c] sm:$0xf]
          %v1721 = vld [vmem:[#allocation11 + $0x60] sm:$0xf]
          %v1722 = vld [vmem:[#allocation11 + $0x64] sm:$0xf]
          %v1723 = vld [vmem:[#allocation11 + $0x68] sm:$0xf]
          %v1724 = vld [vmem:[#allocation11 + $0x6c] sm:$0xf]
          %v1725 = vld [vmem:[#allocation11 + $0x70] sm:$0xf]
          %v1726 = vld [vmem:[#allocation11 + $0x74] sm:$0xf]
          %v1727 = vld [vmem:[#allocation11 + $0x78] sm:$0xf]
          %v1728 = vld [vmem:[#allocation11 + $0x7c] sm:$0xf]
          %v1729 = vld [vmem:[%s8] sm:$0x1]
          %v1731 = vlaneseq
          %v1732 = vshrl.u32 %v1731, 7
          %v1733 = vsub.s32 0, %v1732
          %v1734 = vrot.slane %v1729, %v1733
          %v1768 = vunpack.c.l.b16 %v1697
          %v1769 = vunpack.c.l.b16 %v1698
          %v1770 = vunpack.c.l.b16 %v1699
          %v1771 = vunpack.c.l.b16 %v1700
          %v1772 = vunpack.c.l.b16 %v1701
          %v1773 = vunpack.c.l.b16 %v1702
          %v1774 = vunpack.c.l.b16 %v1703
          %v1775 = vunpack.c.l.b16 %v1704
          %v1776 = vunpack.c.l.b16 %v1705
          %v1777 = vunpack.c.l.b16 %v1706
          %v1778 = vunpack.c.l.b16 %v1707
          %v1779 = vunpack.c.l.b16 %v1708
          %v1780 = vunpack.c.l.b16 %v1709
          %v1781 = vunpack.c.l.b16 %v1710
          %v1782 = vunpack.c.l.b16 %v1711
          %v1783 = vunpack.c.l.b16 %v1712
          %v1784 = vunpack.c.l.b16 %v1713
          %v1785 = vunpack.c.l.b16 %v1714
          %v1786 = vunpack.c.l.b16 %v1715
          %v1787 = vunpack.c.l.b16 %v1716
          %v1788 = vunpack.c.l.b16 %v1717
          %v1789 = vunpack.c.l.b16 %v1718
          %v1790 = vunpack.c.l.b16 %v1719
          %v1791 = vunpack.c.l.b16 %v1720
          %v1792 = vunpack.c.l.b16 %v1721
          %v1793 = vunpack.c.l.b16 %v1722
          %v1794 = vunpack.c.l.b16 %v1723
          %v1795 = vunpack.c.l.b16 %v1724
          %v1796 = vunpack.c.l.b16 %v1725
          %v1797 = vunpack.c.l.b16 %v1726
          %v1798 = vunpack.c.l.b16 %v1727
          %v1799 = vunpack.c.l.b16 %v1728
          %v1800 = vpack.c.b16 %v1769, %v1768
          %v1801 = vpack.c.b16 %v1771, %v1770
          %v1802 = vpack.c.b16 %v1773, %v1772
          %v1803 = vpack.c.b16 %v1775, %v1774
          %v1804 = vpack.c.b16 %v1777, %v1776
          %v1805 = vpack.c.b16 %v1779, %v1778
          %v1806 = vpack.c.b16 %v1781, %v1780
          %v1807 = vpack.c.b16 %v1783, %v1782
          %v1808 = vpack.c.b16 %v1785, %v1784
          %v1809 = vpack.c.b16 %v1787, %v1786
          %v1810 = vpack.c.b16 %v1789, %v1788
          %v1811 = vpack.c.b16 %v1791, %v1790
          %v1812 = vpack.c.b16 %v1793, %v1792
          %v1813 = vpack.c.b16 %v1795, %v1794
          %v1814 = vpack.c.b16 %v1797, %v1796
          %v1815 = vpack.c.b16 %v1799, %v1798
          %1832 = vmatprep.subr.bf16.mxu0 0
          %1833 = vmatpush1.bf16.msra.mxu0 %v1807
          %1834 = vmatprep.subr.bf16.mxu0 0
          %1835 = vmatpush1.bf16.msra.mxu0 %v1806
          %1836 = vmatprep.subr.bf16.mxu0 0
          %1837 = vmatpush1.bf16.msra.mxu0 %v1805
          %1838 = vmatprep.subr.bf16.mxu0 0
          %1839 = vmatpush1.bf16.msra.mxu0 %v1804
          %1840 = vmatprep.subr.bf16.mxu0 0
          %1841 = vmatpush1.bf16.msra.mxu0 %v1803
          %1842 = vmatprep.subr.bf16.mxu0 0
          %1843 = vmatpush1.bf16.msra.mxu0 %v1802
          %1844 = vmatprep.subr.bf16.mxu0 0
          %1845 = vmatpush1.bf16.msra.mxu0 %v1801
          %1846 = vmatprep.subr.bf16.mxu0 0
          %1847 = vmatpush1.bf16.msra.mxu0 %v1800
          %1848 = vmatprep.subr.bf16.mxu0 0
          %1849 = vmatpush2.bf16.msra.mxu0 %v1815
          %1850 = vmatprep.subr.bf16.mxu0 0
          %1851 = vmatpush2.bf16.msra.mxu0 %v1814
          %1852 = vmatprep.subr.bf16.mxu0 0
          %1853 = vmatpush2.bf16.msra.mxu0 %v1813
          %1854 = vmatprep.subr.bf16.mxu0 0
          %1855 = vmatpush2.bf16.msra.mxu0 %v1812
          %1856 = vmatprep.subr.bf16.mxu0 0
          %1857 = vmatpush2.bf16.msra.mxu0 %v1811
          %1858 = vmatprep.subr.bf16.mxu0 0
          %1859 = vmatpush2.bf16.msra.mxu0 %v1810
          %1860 = vmatprep.subr.bf16.mxu0 0
          %1861 = vmatpush2.bf16.msra.mxu0 %v1809
          %1862 = vmatprep.subr.bf16.mxu0 0
          %1863 = vmatpush2.bf16.msra.mxu0 %v1808
          %1864 = vmatprep.mubr.bf16.mxu0 %v1696
          %1865 = vmatmul.mubr.bf16.gmra.mxu0 %v1695
          %v1866 = vpop.f32.mrf.mxu0
          %v1867 = vadd.f32 %v1734, %v1866
          %v1868 = vpop.f32.mrf.mxu0
          %v1869 = vpop.f32.mrf.mxu0
          %v1870 = vpop.f32.mrf.mxu0
          %1871 = vdwg.mxu0
          %v1872 = vlaneseq
          %v1873 = vand.u32 %v1872, 127
          %vm1874 = vcmp.lt.s32.totalorder %v1873, 2
          %v1875 = vsel %vm1874, %v1867, -1e+30
          %1876 = vmax.xlane.f32.xlu0 %v1875
          %v1877 = vpop.xlane.xlu0 %1876
          %v1878 = vsub.f32 %v1875, %v1877
          %v1879 = vmul.f32 %v1878, 1.442695
          %v1880 = vpow.pop %v1879
          %1881 = vadd.xlane.f32.xlu0 %v1880
          %v1882 = vpop.xlane.xlu0 %1881
          %v1883 = vrcp.pop %v1882
          %v1884 = vmul.f32 %v1880, %v1883
          %1885 = vst [vmem:[%s9] sm:$0xff] %v1884
        $region88: #{food5k_classifier.1} parent=55 // pred_fallthru
          _
        // Predicated region
        $region89: #{food5k_classifier.1} parent=55 // pred_check
          %p1886 = pneg %p240
        $region90: #{food5k_classifier.1} parent=55 // pred_check_branch
          %1888 = sbr.rel (%p1886) target = $region92
        $region91: #{food5k_classifier.1} parent=55 // pred_region
          _
        $region92: #{food5k_classifier.1} parent=55 // pred_fallthru
          _
        // Predicated region
        $region93: #{food5k_classifier.1} parent=55 // pred_check
          %p1889 = pneg %p240
        $region94: #{food5k_classifier.1} parent=55 // pred_check_branch
          %1891 = sbr.rel (%p1889) target = $region96
        $region95: #{food5k_classifier.1} parent=55 // pred_region
          _
        $region96: #{food5k_classifier.1} parent=55 // pred_fallthru
          _
      $region56: #{food5k_classifier.1} parent=5 // pred_fallthru
        _
      %p1892 = scmp.le.s32.totalorder 2, %s23
      // Predicated region
      $region97: #{food5k_classifier.1} parent=5 // pred_check
        %p1893 = pneg %p1892
      $region98: #{food5k_classifier.1} parent=5 // pred_check_branch
        %1895 = sbr.rel (%p1893) target = $region100
      $region99: #{food5k_classifier.1} parent=5 // pred_region
        %s1896 = ssub.s32 %s23, 2
      $region100: #{food5k_classifier.1} parent=5 // pred_fallthru
        _
    $region6: #{food5k_classifier.1} parent=1 // loop_footer
      %s27 = sadd.s32 1, %s23
    $region7: #{food5k_classifier.1} parent=1 // loop_footer_branch
      %22 = sbr.rel target = $region3
    $region8: #{food5k_classifier.1} parent=1 // loop_exit
      _
    %1897 = vsyncpa [#allocation4], 1
    %s1898 = scalar_lea.sflag [#allocation4], 1
    %1899 = vsyncpa %s1898, 1
    %1900 = vsyncpa [#allocation6], 1
    %s1901 = scalar_lea.sflag [#allocation6], 1
    %1902 = vsyncpa %s1901, 1
    %1903 = vsyncpa [#allocation9], 1
    %1904 = vsyncpa [#allocation12], 1

</llo_original>
